<compile_context>
chip_gen: v7x
topology: tpu7x:2x2x1
jax: 0.10.0
libtpu: 0.0.40
codegen_flags: <defaults>
</compile_context>

<pallas_src>
import functools

import numpy as np
import jax
import jax.numpy as jnp
from jax import lax
from jax.experimental import pallas as pl
from jax.experimental.pallas import tpu as pltpu

CONV_OC, CONV_KH, CONV_KW = 8, 4, 5
IMG_H, IMG_W = 4, 52
OUT_W = IMG_W - CONV_KW + 1          # 48
CONV_IN = IMG_H * IMG_W              # 208
CONV_FEAT = CONV_OC * OUT_W          # 384 == 48 * 8
TAIL = 52 + 16 * 4                   # 116
IN_FEAT = CONV_IN + TAIL             # 324
IN_PAD = 384                         # front-matmul K padded to 3 full 128-lane vregs

FC_DIMS = [(CONV_FEAT + TAIL, 128), (128, 128), (128, 128), (128, 64),
           (64, 64), (64, 64), (64, 64), (64, 32), (32, 16), (16, 1)]
NUM_FC = 10

MAX_TILE = 2048                      # rows per grid step (bf16 input block ~1.5 MB)


# ----------------------------- parameters ----------------------------------

def init_params(key):
    """Deterministic synthetic init mirroring PyTorch's default fan-in uniform."""
    p = {}
    key, k1, k2 = jax.random.split(key, 3)
    bound = 1.0 / np.sqrt(CONV_KH * CONV_KW)  # fan_in = 1*4*5
    p["Wc"] = jax.random.uniform(k1, (CONV_OC, 1, CONV_KH, CONV_KW),
                                 jnp.float32, -bound, bound)
    p["bc"] = jax.random.uniform(k2, (CONV_OC,), jnp.float32, -bound, bound)
    for i, (fin, fout) in enumerate(FC_DIMS):
        key, kw, kb = jax.random.split(key, 3)
        bound = 1.0 / np.sqrt(fin)
        # stored as (in, out): reference does x @ W + b
        p[f"W{i}"] = jax.random.uniform(kw, (fin, fout), jnp.float32, -bound, bound)
        p[f"b{i}"] = jax.random.uniform(kb, (fout,), jnp.float32, -bound, bound)
    return p


def _pool_matrix(n):
    """(n, n//2) matrix with the 0.5 baked in: AvgPool1d(2) == x @ P."""
    m = np.zeros((n, n // 2), np.float32)
    j = np.arange(n // 2)
    m[2 * j, j] = 0.5
    m[2 * j + 1, j] = 0.5
    return jnp.asarray(m)


def _conv_toeplitz(wc):
    """(208, 384) K with (x_img_flat @ K)[:, c*48 + w] == conv1 output (channel-major)."""
    c = np.arange(CONV_OC)[:, None, None, None]
    kh = np.arange(CONV_KH)[None, :, None, None]
    kw = np.arange(CONV_KW)[None, None, :, None]
    w = np.arange(OUT_W)[None, None, None, :]
    shape = (CONV_OC, CONV_KH, CONV_KW, OUT_W)
    rows = np.broadcast_to(kh * IMG_W + kw + w, shape).reshape(-1)
    cols = np.broadcast_to(c * OUT_W + w, shape).reshape(-1)
    vals = jnp.broadcast_to(wc[:, 0, :, :, None], shape).reshape(-1)
    # .add (not .set) so this stays correct even if (row, col) pairs ever collide
    return jnp.zeros((CONV_IN, CONV_FEAT), jnp.float32).at[rows, cols].add(vals)


def build_kernel_weights(p):
    """Built ONCE at init: fuse conv1+fc0, bake pools, transpose to (out, in),
    concat pool matrices into fc3/fc7, merge fc9 + fc8-pool into one tail matmul,
    pack biases, cast bf16."""
    k = _conv_toeplitz(p["Wc"])                               # (208, 384) f32
    bcb = jnp.repeat(p["bc"], OUT_W).reshape(1, CONV_FEAT)    # conv bias, channel-major
    w0a = p["W0"][:CONV_FEAT]                                 # rows for conv features
    w0b = p["W0"][CONV_FEAT:]                                 # rows for tail features

    # algebraic fusion of conv1 + fc0:  relu(Wfront_T @ x_T + bfront)
    wfront = jnp.concatenate([k @ w0a, w0b], axis=0)          # (324, 128)
    wfront = jnp.pad(wfront, ((0, IN_PAD - IN_FEAT), (0, 0))) # (384, 128), zero K-pad
    bfront = p["b0"] + (bcb @ w0a).reshape(-1)                # (128,)

    p128 = _pool_matrix(128)                                  # (128, 64), 0.5 baked in
    p64 = _pool_matrix(64)                                    # (64, 32)
    p32w9 = _pool_matrix(32) @ p["W9"]                        # (32, 1)

    # transposed (out, in) weights; pools row-concatenated to widen M
    wf_t = wfront.T                                           # (128, 384)
    w1_t, w2_t = p["W1"].T, p["W2"].T                         # (128, 128)
    w3p_t = jnp.concatenate([p["W3"].T, p128.T], axis=0)      # (128, 128) = [fc3; pool]
    w4_t, w5_t, w6_t = p["W4"].T, p["W5"].T, p["W6"].T        # (64, 64)
    w7p_t = jnp.concatenate([p["W7"].T, p64.T], axis=0)       # (64, 64)  = [fc7; pool]
    w8_t = p["W8"].T                                          # (16, 32)
    # fc9 + fc8's pool-residual merged:  out = [W9^T | (P32@W9)^T] @ [h8; h7]
    wt = jnp.concatenate([p["W9"].T, p32w9.T], axis=1)        # (1, 48)
    wt = jnp.pad(wt, ((0, 7), (0, 0)))                        # (8, 48), rows 1-7 zero

    biases = [bfront, p["b1"], p["b2"], p["b3"], p["b4"], p["b5"],
              p["b6"], p["b7"], p["b8"], p["b9"]]
    bias_pack = jnp.zeros((128, NUM_FC), jnp.float32)
    for i, bvec in enumerate(biases):
        bias_pack = bias_pack.at[:bvec.shape[0], i].set(bvec)

    bf16 = lambda a: a.astype(jnp.bfloat16)
    return (bf16(wf_t), bf16(w1_t), bf16(w2_t), bf16(w3p_t), bf16(w4_t),
            bf16(w5_t), bf16(w6_t), bf16(w7p_t), bf16(w8_t), bf16(wt),
            bias_pack)


# ------------------------------- kernel -------------------------------------

def mro_first_kernel(x_ref, wf, w1, w2, w3p, w4, w5, w6, w7p, w8, wt,
                     b_ref, o_ref):
    def mm(w_ref, a):   # (out, in) @ (in, TB): bf16 operands, f32 MXU accumulation
        return jnp.dot(w_ref[...], a.astype(jnp.bfloat16),
                       preferred_element_type=jnp.float32)

    def bias(i, n):     # column i of the packed bias array; broadcasts over lanes
        return b_ref[0:n, i:i + 1]

    relu = lambda v: jnp.maximum(v, 0.0)

    x = x_ref[...]                                     # (384, TB) bf16, feature-major
    h = relu(mm(wf, x) + bias(0, 128))                 # fused conv1 + fc0  (128, TB)
    h = relu(mm(w1, h) + bias(1, 128)) + h
    h = relu(mm(w2, h) + bias(2, 128)) + h
    y = mm(w3p, h)                                     # [fc3 ; 0.5*avgpool]  (128, TB)
    h = relu(y[:64] + bias(3, 64)) + y[64:]            # (64, TB)
    h = relu(mm(w4, h) + bias(4, 64)) + h
    h = relu(mm(w5, h) + bias(5, 64)) + h
    h = relu(mm(w6, h) + bias(6, 64)) + h
    y = mm(w7p, h)                                     # [fc7 ; 0.5*avgpool]  (64, TB)
    h7 = relu(y[:32] + bias(7, 32)) + y[32:]           # (32, TB)
    h8 = relu(mm(w8, h7) + bias(8, 16))                # (16, TB)
    # fc9 with the fc8 pool-residual folded in: one K=48 matmul, row 0 = result
    yt = mm(wt, jnp.concatenate([h8, h7], axis=0))     # (8, TB)
    o_ref[...] = yt[0:1, :] + bias(9, 1)               # lane-dense (1, TB) store


# ------------------------------- wrapper -------------------------------------

def _round_up(n, m):
    return ((n + m - 1) // m) * m


def _num_tensorcores():
    """2 on v7x (megacore grid sharding), else 1. Perf-only heuristic."""
    try:
        kind = jax.devices()[0].device_kind.lower()
        if "v7" in kind or "7x" in kind:
            return 2
    except Exception:
        pass
    return 1


def _choose_batch_tile(batch):
    """Bucketed tile (power of two, avoids recompiles). Single big tile on
    v5e/v6e; two tiles (one per TensorCore) on v7x once the batch is big enough."""
    ncores = _num_tensorcores()
    bucket = max(8, int(pl.next_power_of_2(max(int(batch), 1))))
    bucket = min(bucket, MAX_TILE * ncores)
    if ncores > 1 and bucket >= 256:
        return min(MAX_TILE, max(128, bucket // ncores))
    return min(MAX_TILE, bucket)


@functools.partial(jax.jit, static_argnames=("batch_tile",))
def _mro_first_pallas(x, weights, batch_tile):
    b = x.shape[0]
    bp = _round_up(b, batch_tile)
    # one fused XLA copy: pad batch + features, transpose to feature-major, cast bf16
    xt = jnp.pad(x, ((0, bp - b), (0, IN_PAD - IN_FEAT))).astype(jnp.bfloat16).T

    in_specs = [pl.BlockSpec((IN_PAD, batch_tile), lambda i: (0, i))]
    for w in weights:  # whole-array blocks, broadcast over the grid
        in_specs.append(pl.BlockSpec(w.shape, lambda i: (0, 0)))

    out = pl.pallas_call(
        mro_first_kernel,
        out_shape=jax.ShapeDtypeStruct((1, bp), jnp.float32),
        grid_spec=pltpu.PrefetchScalarGridSpec(
            num_scalar_prefetch=0,
            grid=(bp // batch_tile,),
            in_specs=in_specs,
            out_specs=pl.BlockSpec((1, batch_tile), lambda i: (0, i)),
        ),
        compiler_params=pltpu.CompilerParams(
            dimension_semantics=("parallel",)),
    )(xt, *weights)
    return out[:, :b].T          # back to (b, 1)


def make_mro_first_forward(params):
    """Build kernel weights once; return a jitted forward closure."""
    weights = build_kernel_weights(params)

    def forward(x):
        tile = _choose_batch_tile(x.shape[0])
        return _mro_first_pallas(x, weights, tile)

    return forward


# ---------------------------- pure-JAX reference -----------------------------

def reference_forward(x, p):
    b = x.shape[0]
    relu = jax.nn.relu

    def avgp(h):
        n = h.shape[1]
        return h.reshape(b, n // 2, 2).mean(axis=-1)

    xc = x[:, :CONV_IN].reshape(b, 1, IMG_H, IMG_W)
    f1 = lax.conv_general_dilated(xc, p["Wc"], (1, 1), "VALID",
                                  dimension_numbers=("NCHW", "OIHW", "NCHW"))
    f1 = (f1 + p["bc"].reshape(1, CONV_OC, 1, 1)).reshape(b, CONV_FEAT)
    h = jnp.concatenate([f1, x[:, CONV_IN:IN_FEAT]], axis=1)

    def lin(v, i):
        return v @ p[f"W{i}"] + p[f"b{i}"]

    h = relu(lin(h, 0))
    h = relu(lin(h, 1)) + h
    h = relu(lin(h, 2)) + h
    h = relu(lin(h, 3)) + avgp(h)
    h = relu(lin(h, 4)) + h
    h = relu(lin(h, 5)) + h
    h = relu(lin(h, 6)) + h
    h = relu(lin(h, 7)) + avgp(h)
    h = relu(lin(h, 8)) + avgp(h)
    return lin(h, 9)


if __name__ == "__main__":
    key = jax.random.PRNGKey(0)
    pkey, xkey = jax.random.split(key)
    params = init_params(pkey)
    x = jax.random.normal(xkey, (8, IN_FEAT), jnp.float32)  # (B, 52*5 + 16*4)

    forward = make_mro_first_forward(params)
    out = jax.block_until_ready(forward(x))
    ref = reference_forward(x, params)

    assert out.shape == (8, 1), out.shape
    err = float(jnp.max(jnp.abs(out - ref)))
    scale = float(jnp.max(jnp.abs(ref))) + 1.0
    if err > 5e-2 * scale:  # bf16 matmul inputs, f32 accumulation
        raise AssertionError(f"kernel/reference mismatch: max abs err {err}")
    print("KERNEL_OK")
</pallas_src>

<mosaic_0001>
module attributes {stable_mosaic.version = 11 : i64} {
  func.func @mro_first_kernel(%arg0: i32, %arg1: memref<384x8xbf16, #tpu.memory_space<vmem>>, %arg2: memref<128x384xbf16, #tpu.memory_space<vmem>>, %arg3: memref<128x128xbf16, #tpu.memory_space<vmem>>, %arg4: memref<128x128xbf16, #tpu.memory_space<vmem>>, %arg5: memref<128x128xbf16, #tpu.memory_space<vmem>>, %arg6: memref<64x64xbf16, #tpu.memory_space<vmem>>, %arg7: memref<64x64xbf16, #tpu.memory_space<vmem>>, %arg8: memref<64x64xbf16, #tpu.memory_space<vmem>>, %arg9: memref<64x64xbf16, #tpu.memory_space<vmem>>, %arg10: memref<16x32xbf16, #tpu.memory_space<vmem>>, %arg11: memref<8x48xbf16, #tpu.memory_space<vmem>>, %arg12: memref<128x10xf32, #tpu.memory_space<vmem>>, %arg13: memref<1x8xf32, #tpu.memory_space<vmem>>) attributes {dimension_semantics = [#tpu.dimension_semantics<parallel>], iteration_bounds = array<i64: 1>, scalar_prefetch = 0 : i64, scratch_operands = 0 : i64, tpu.core_type = #tpu.core_type<tc>, window_params = [{transform_indices = @transform_0, window_bounds = array<i64: 384, 8>}, {pipeline_mode = #tpu.pipeline_mode<synchronous>, transform_indices = @transform_1, window_bounds = array<i64: 128, 384>}, {pipeline_mode = #tpu.pipeline_mode<synchronous>, transform_indices = @transform_2, window_bounds = array<i64: 128, 128>}, {pipeline_mode = #tpu.pipeline_mode<synchronous>, transform_indices = @transform_3, window_bounds = array<i64: 128, 128>}, {pipeline_mode = #tpu.pipeline_mode<synchronous>, transform_indices = @transform_4, window_bounds = array<i64: 128, 128>}, {pipeline_mode = #tpu.pipeline_mode<synchronous>, transform_indices = @transform_5, window_bounds = array<i64: 64, 64>}, {pipeline_mode = #tpu.pipeline_mode<synchronous>, transform_indices = @transform_6, window_bounds = array<i64: 64, 64>}, {pipeline_mode = #tpu.pipeline_mode<synchronous>, transform_indices = @transform_7, window_bounds = array<i64: 64, 64>}, {pipeline_mode = #tpu.pipeline_mode<synchronous>, transform_indices = @transform_8, window_bounds = array<i64: 64, 64>}, {pipeline_mode = #tpu.pipeline_mode<synchronous>, transform_indices = @transform_9, window_bounds = array<i64: 16, 32>}, {pipeline_mode = #tpu.pipeline_mode<synchronous>, transform_indices = @transform_10, window_bounds = array<i64: 8, 48>}, {pipeline_mode = #tpu.pipeline_mode<synchronous>, transform_indices = @transform_11, window_bounds = array<i64: 128, 10>}, {transform_indices = @transform_12, window_bounds = array<i64: 1, 8>}]} {
    %c0 = arith.constant 0 : index
    %c0_0 = arith.constant 0 : index
    %0 = vector.load %arg1[%c0, %c0_0] : memref<384x8xbf16, #tpu.memory_space<vmem>>, vector<384x8xbf16>
    %c0_1 = arith.constant 0 : index
    %c0_2 = arith.constant 0 : index
    %1 = vector.load %arg2[%c0_1, %c0_2] : memref<128x384xbf16, #tpu.memory_space<vmem>>, vector<128x384xbf16>
    %cst = arith.constant dense<0.000000e+00> : vector<128x8xf32>
    %2 = tpu.matmul %1, %0, %cst {dimension_numbers = #tpu.dot_dimension_numbers<[1], [0], [0], [1], [0, 0, 1, 1], [], []>} : vector<128x384xbf16>, vector<384x8xbf16>, vector<128x8xf32> -> vector<128x8xf32>
    %c0_3 = arith.constant 0 : index
    %c0_4 = arith.constant 0 : index
    %3 = vector.load %arg12[%c0_3, %c0_4] : memref<128x10xf32, #tpu.memory_space<vmem>>, vector<128x1xf32>
    %4 = vector.broadcast %3 : vector<128x1xf32> to vector<128x8xf32>
    %5 = arith.addf %2, %4 : vector<128x8xf32>
    %cst_5 = arith.constant 0.000000e+00 : f32
    %6 = vector.broadcast %cst_5 : f32 to vector<128x8xf32>
    %7 = arith.maximumf %5, %6 : vector<128x8xf32>
    %c0_6 = arith.constant 0 : index
    %c0_7 = arith.constant 0 : index
    %8 = vector.load %arg3[%c0_6, %c0_7] : memref<128x128xbf16, #tpu.memory_space<vmem>>, vector<128x128xbf16>
    %9 = arith.truncf %7 : vector<128x8xf32> to vector<128x8xbf16>
    %cst_8 = arith.constant dense<0.000000e+00> : vector<128x8xf32>
    %10 = tpu.matmul %8, %9, %cst_8 {dimension_numbers = #tpu.dot_dimension_numbers<[1], [0], [0], [1], [0, 0, 1, 1], [], []>} : vector<128x128xbf16>, vector<128x8xbf16>, vector<128x8xf32> -> vector<128x8xf32>
    %c0_9 = arith.constant 0 : index
    %c1 = arith.constant 1 : index
    %11 = vector.load %arg12[%c0_9, %c1] : memref<128x10xf32, #tpu.memory_space<vmem>>, vector<128x1xf32>
    %12 = vector.broadcast %11 : vector<128x1xf32> to vector<128x8xf32>
    %13 = arith.addf %10, %12 : vector<128x8xf32>
    %cst_10 = arith.constant 0.000000e+00 : f32
    %14 = vector.broadcast %cst_10 : f32 to vector<128x8xf32>
    %15 = arith.maximumf %13, %14 : vector<128x8xf32>
    %16 = arith.addf %15, %7 : vector<128x8xf32>
    %c0_11 = arith.constant 0 : index
    %c0_12 = arith.constant 0 : index
    %17 = vector.load %arg4[%c0_11, %c0_12] : memref<128x128xbf16, #tpu.memory_space<vmem>>, vector<128x128xbf16>
    %18 = arith.truncf %16 : vector<128x8xf32> to vector<128x8xbf16>
    %cst_13 = arith.constant dense<0.000000e+00> : vector<128x8xf32>
    %19 = tpu.matmul %17, %18, %cst_13 {dimension_numbers = #tpu.dot_dimension_numbers<[1], [0], [0], [1], [0, 0, 1, 1], [], []>} : vector<128x128xbf16>, vector<128x8xbf16>, vector<128x8xf32> -> vector<128x8xf32>
    %c0_14 = arith.constant 0 : index
    %c2 = arith.constant 2 : index
    %20 = vector.load %arg12[%c0_14, %c2] : memref<128x10xf32, #tpu.memory_space<vmem>>, vector<128x1xf32>
    %21 = vector.broadcast %20 : vector<128x1xf32> to vector<128x8xf32>
    %22 = arith.addf %19, %21 : vector<128x8xf32>
    %cst_15 = arith.constant 0.000000e+00 : f32
    %23 = vector.broadcast %cst_15 : f32 to vector<128x8xf32>
    %24 = arith.maximumf %22, %23 : vector<128x8xf32>
    %25 = arith.addf %24, %16 : vector<128x8xf32>
    %c0_16 = arith.constant 0 : index
    %c0_17 = arith.constant 0 : index
    %26 = vector.load %arg5[%c0_16, %c0_17] : memref<128x128xbf16, #tpu.memory_space<vmem>>, vector<128x128xbf16>
    %27 = arith.truncf %25 : vector<128x8xf32> to vector<128x8xbf16>
    %cst_18 = arith.constant dense<0.000000e+00> : vector<128x8xf32>
    %28 = tpu.matmul %26, %27, %cst_18 {dimension_numbers = #tpu.dot_dimension_numbers<[1], [0], [0], [1], [0, 0, 1, 1], [], []>} : vector<128x128xbf16>, vector<128x8xbf16>, vector<128x8xf32> -> vector<128x8xf32>
    %29 = vector.extract_strided_slice %28 {offsets = [0, 0], sizes = [64, 8], strides = [1, 1]} : vector<128x8xf32> to vector<64x8xf32>
    %c0_19 = arith.constant 0 : index
    %c3 = arith.constant 3 : index
    %30 = vector.load %arg12[%c0_19, %c3] : memref<128x10xf32, #tpu.memory_space<vmem>>, vector<64x1xf32>
    %31 = vector.broadcast %30 : vector<64x1xf32> to vector<64x8xf32>
    %32 = arith.addf %29, %31 : vector<64x8xf32>
    %cst_20 = arith.constant 0.000000e+00 : f32
    %33 = vector.broadcast %cst_20 : f32 to vector<64x8xf32>
    %34 = arith.maximumf %32, %33 : vector<64x8xf32>
    %35 = vector.extract_strided_slice %28 {offsets = [64, 0], sizes = [64, 8], strides = [1, 1]} : vector<128x8xf32> to vector<64x8xf32>
    %36 = arith.addf %34, %35 : vector<64x8xf32>
    %c0_21 = arith.constant 0 : index
    %c0_22 = arith.constant 0 : index
    %37 = vector.load %arg6[%c0_21, %c0_22] : memref<64x64xbf16, #tpu.memory_space<vmem>>, vector<64x64xbf16>
    %38 = arith.truncf %36 : vector<64x8xf32> to vector<64x8xbf16>
    %cst_23 = arith.constant dense<0.000000e+00> : vector<64x8xf32>
    %39 = tpu.matmul %37, %38, %cst_23 {dimension_numbers = #tpu.dot_dimension_numbers<[1], [0], [0], [1], [0, 0, 1, 1], [], []>} : vector<64x64xbf16>, vector<64x8xbf16>, vector<64x8xf32> -> vector<64x8xf32>
    %c0_24 = arith.constant 0 : index
    %c4 = arith.constant 4 : index
    %40 = vector.load %arg12[%c0_24, %c4] : memref<128x10xf32, #tpu.memory_space<vmem>>, vector<64x1xf32>
    %41 = vector.broadcast %40 : vector<64x1xf32> to vector<64x8xf32>
    %42 = arith.addf %39, %41 : vector<64x8xf32>
    %cst_25 = arith.constant 0.000000e+00 : f32
    %43 = vector.broadcast %cst_25 : f32 to vector<64x8xf32>
    %44 = arith.maximumf %42, %43 : vector<64x8xf32>
    %45 = arith.addf %44, %36 : vector<64x8xf32>
    %c0_26 = arith.constant 0 : index
    %c0_27 = arith.constant 0 : index
    %46 = vector.load %arg7[%c0_26, %c0_27] : memref<64x64xbf16, #tpu.memory_space<vmem>>, vector<64x64xbf16>
    %47 = arith.truncf %45 : vector<64x8xf32> to vector<64x8xbf16>
    %cst_28 = arith.constant dense<0.000000e+00> : vector<64x8xf32>
    %48 = tpu.matmul %46, %47, %cst_28 {dimension_numbers = #tpu.dot_dimension_numbers<[1], [0], [0], [1], [0, 0, 1, 1], [], []>} : vector<64x64xbf16>, vector<64x8xbf16>, vector<64x8xf32> -> vector<64x8xf32>
    %c0_29 = arith.constant 0 : index
    %c5 = arith.constant 5 : index
    %49 = vector.load %arg12[%c0_29, %c5] : memref<128x10xf32, #tpu.memory_space<vmem>>, vector<64x1xf32>
    %50 = vector.broadcast %49 : vector<64x1xf32> to vector<64x8xf32>
    %51 = arith.addf %48, %50 : vector<64x8xf32>
    %cst_30 = arith.constant 0.000000e+00 : f32
    %52 = vector.broadcast %cst_30 : f32 to vector<64x8xf32>
    %53 = arith.maximumf %51, %52 : vector<64x8xf32>
    %54 = arith.addf %53, %45 : vector<64x8xf32>
    %c0_31 = arith.constant 0 : index
    %c0_32 = arith.constant 0 : index
    %55 = vector.load %arg8[%c0_31, %c0_32] : memref<64x64xbf16, #tpu.memory_space<vmem>>, vector<64x64xbf16>
    %56 = arith.truncf %54 : vector<64x8xf32> to vector<64x8xbf16>
    %cst_33 = arith.constant dense<0.000000e+00> : vector<64x8xf32>
    %57 = tpu.matmul %55, %56, %cst_33 {dimension_numbers = #tpu.dot_dimension_numbers<[1], [0], [0], [1], [0, 0, 1, 1], [], []>} : vector<64x64xbf16>, vector<64x8xbf16>, vector<64x8xf32> -> vector<64x8xf32>
    %c0_34 = arith.constant 0 : index
    %c6 = arith.constant 6 : index
    %58 = vector.load %arg12[%c0_34, %c6] : memref<128x10xf32, #tpu.memory_space<vmem>>, vector<64x1xf32>
    %59 = vector.broadcast %58 : vector<64x1xf32> to vector<64x8xf32>
    %60 = arith.addf %57, %59 : vector<64x8xf32>
    %cst_35 = arith.constant 0.000000e+00 : f32
    %61 = vector.broadcast %cst_35 : f32 to vector<64x8xf32>
    %62 = arith.maximumf %60, %61 : vector<64x8xf32>
    %63 = arith.addf %62, %54 : vector<64x8xf32>
    %c0_36 = arith.constant 0 : index
    %c0_37 = arith.constant 0 : index
    %64 = vector.load %arg9[%c0_36, %c0_37] : memref<64x64xbf16, #tpu.memory_space<vmem>>, vector<64x64xbf16>
    %65 = arith.truncf %63 : vector<64x8xf32> to vector<64x8xbf16>
    %cst_38 = arith.constant dense<0.000000e+00> : vector<64x8xf32>
    %66 = tpu.matmul %64, %65, %cst_38 {dimension_numbers = #tpu.dot_dimension_numbers<[1], [0], [0], [1], [0, 0, 1, 1], [], []>} : vector<64x64xbf16>, vector<64x8xbf16>, vector<64x8xf32> -> vector<64x8xf32>
    %67 = vector.extract_strided_slice %66 {offsets = [0, 0], sizes = [32, 8], strides = [1, 1]} : vector<64x8xf32> to vector<32x8xf32>
    %c0_39 = arith.constant 0 : index
    %c7 = arith.constant 7 : index
    %68 = vector.load %arg12[%c0_39, %c7] : memref<128x10xf32, #tpu.memory_space<vmem>>, vector<32x1xf32>
    %69 = vector.broadcast %68 : vector<32x1xf32> to vector<32x8xf32>
    %70 = arith.addf %67, %69 : vector<32x8xf32>
    %cst_40 = arith.constant 0.000000e+00 : f32
    %71 = vector.broadcast %cst_40 : f32 to vector<32x8xf32>
    %72 = arith.maximumf %70, %71 : vector<32x8xf32>
    %73 = vector.extract_strided_slice %66 {offsets = [32, 0], sizes = [32, 8], strides = [1, 1]} : vector<64x8xf32> to vector<32x8xf32>
    %74 = arith.addf %72, %73 : vector<32x8xf32>
    %c0_41 = arith.constant 0 : index
    %c0_42 = arith.constant 0 : index
    %75 = vector.load %arg10[%c0_41, %c0_42] : memref<16x32xbf16, #tpu.memory_space<vmem>>, vector<16x32xbf16>
    %76 = arith.truncf %74 : vector<32x8xf32> to vector<32x8xbf16>
    %cst_43 = arith.constant dense<0.000000e+00> : vector<16x8xf32>
    %77 = tpu.matmul %75, %76, %cst_43 {dimension_numbers = #tpu.dot_dimension_numbers<[1], [0], [0], [1], [0, 0, 1, 1], [], []>} : vector<16x32xbf16>, vector<32x8xbf16>, vector<16x8xf32> -> vector<16x8xf32>
    %c0_44 = arith.constant 0 : index
    %c8 = arith.constant 8 : index
    %78 = vector.load %arg12[%c0_44, %c8] : memref<128x10xf32, #tpu.memory_space<vmem>>, vector<16x1xf32>
    %79 = vector.broadcast %78 : vector<16x1xf32> to vector<16x8xf32>
    %80 = arith.addf %77, %79 : vector<16x8xf32>
    %cst_45 = arith.constant 0.000000e+00 : f32
    %81 = vector.broadcast %cst_45 : f32 to vector<16x8xf32>
    %82 = arith.maximumf %80, %81 : vector<16x8xf32>
    %83 = tpu.concatenate %82, %74 in 0 : vector<16x8xf32>, vector<32x8xf32> -> vector<48x8xf32>
    %c0_46 = arith.constant 0 : index
    %c0_47 = arith.constant 0 : index
    %84 = vector.load %arg11[%c0_46, %c0_47] : memref<8x48xbf16, #tpu.memory_space<vmem>>, vector<8x48xbf16>
    %85 = arith.truncf %83 : vector<48x8xf32> to vector<48x8xbf16>
    %cst_48 = arith.constant dense<0.000000e+00> : vector<8x8xf32>
    %86 = tpu.matmul %84, %85, %cst_48 {dimension_numbers = #tpu.dot_dimension_numbers<[1], [0], [0], [1], [0, 0, 1, 1], [], []>} : vector<8x48xbf16>, vector<48x8xbf16>, vector<8x8xf32> -> vector<8x8xf32>
    %87 = vector.extract_strided_slice %86 {offsets = [0, 0], sizes = [1, 8], strides = [1, 1]} : vector<8x8xf32> to vector<1x8xf32>
    %c0_49 = arith.constant 0 : index
    %c9 = arith.constant 9 : index
    %88 = vector.load %arg12[%c0_49, %c9] : memref<128x10xf32, #tpu.memory_space<vmem>>, vector<1x1xf32>
    %89 = vector.broadcast %88 : vector<1x1xf32> to vector<1x8xf32>
    %90 = arith.addf %87, %89 : vector<1x8xf32>
    %c0_50 = arith.constant 0 : index
    %c0_51 = arith.constant 0 : index
    %91 = vector.load %arg13[%c0_50, %c0_51] : memref<1x8xf32, #tpu.memory_space<vmem>>, vector<1x8xf32>
    tpu.vector_store %arg13[%c0_50, %c0_51], %90 {strides = array<i32>} : memref<1x8xf32, #tpu.memory_space<vmem>>, vector<1x8xf32>,
    return
  }
  func.func @transform_0(%arg0: i32) -> (i32, i32) {
    %c0_i32 = arith.constant 0 : i32
    %c0_i32_0 = arith.constant 0 : i32
    return %c0_i32, %arg0 : i32, i32
  }
  func.func @transform_1(%arg0: i32) -> (i32, i32) {
    %c0_i32 = arith.constant 0 : i32
    %c0_i32_0 = arith.constant 0 : i32
    %c0_i32_1 = arith.constant 0 : i32
    return %c0_i32, %c0_i32_0 : i32, i32
  }
  func.func @transform_2(%arg0: i32) -> (i32, i32) {
    %c0_i32 = arith.constant 0 : i32
    %c0_i32_0 = arith.constant 0 : i32
    %c0_i32_1 = arith.constant 0 : i32
    return %c0_i32, %c0_i32_0 : i32, i32
  }
  func.func @transform_3(%arg0: i32) -> (i32, i32) {
    %c0_i32 = arith.constant 0 : i32
    %c0_i32_0 = arith.constant 0 : i32
    %c0_i32_1 = arith.constant 0 : i32
    return %c0_i32, %c0_i32_0 : i32, i32
  }
  func.func @transform_4(%arg0: i32) -> (i32, i32) {
    %c0_i32 = arith.constant 0 : i32
    %c0_i32_0 = arith.constant 0 : i32
    %c0_i32_1 = arith.constant 0 : i32
    return %c0_i32, %c0_i32_0 : i32, i32
  }
  func.func @transform_5(%arg0: i32) -> (i32, i32) {
    %c0_i32 = arith.constant 0 : i32
    %c0_i32_0 = arith.constant 0 : i32
    %c0_i32_1 = arith.constant 0 : i32
    return %c0_i32, %c0_i32_0 : i32, i32
  }
  func.func @transform_6(%arg0: i32) -> (i32, i32) {
    %c0_i32 = arith.constant 0 : i32
    %c0_i32_0 = arith.constant 0 : i32
    %c0_i32_1 = arith.constant 0 : i32
    return %c0_i32, %c0_i32_0 : i32, i32
  }
  func.func @transform_7(%arg0: i32) -> (i32, i32) {
    %c0_i32 = arith.constant 0 : i32
    %c0_i32_0 = arith.constant 0 : i32
    %c0_i32_1 = arith.constant 0 : i32
    return %c0_i32, %c0_i32_0 : i32, i32
  }
  func.func @transform_8(%arg0: i32) -> (i32, i32) {
    %c0_i32 = arith.constant 0 : i32
    %c0_i32_0 = arith.constant 0 : i32
    %c0_i32_1 = arith.constant 0 : i32
    return %c0_i32, %c0_i32_0 : i32, i32
  }
  func.func @transform_9(%arg0: i32) -> (i32, i32) {
    %c0_i32 = arith.constant 0 : i32
    %c0_i32_0 = arith.constant 0 : i32
    %c0_i32_1 = arith.constant 0 : i32
    return %c0_i32, %c0_i32_0 : i32, i32
  }
  func.func @transform_10(%arg0: i32) -> (i32, i32) {
    %c0_i32 = arith.constant 0 : i32
    %c0_i32_0 = arith.constant 0 : i32
    %c0_i32_1 = arith.constant 0 : i32
    return %c0_i32, %c0_i32_0 : i32, i32
  }
  func.func @transform_11(%arg0: i32) -> (i32, i32) {
    %c0_i32 = arith.constant 0 : i32
    %c0_i32_0 = arith.constant 0 : i32
    %c0_i32_1 = arith.constant 0 : i32
    return %c0_i32, %c0_i32_0 : i32, i32
  }
  func.func @transform_12(%arg0: i32) -> (i32, i32) {
    %c0_i32 = arith.constant 0 : i32
    %c0_i32_0 = arith.constant 0 : i32
    return %c0_i32, %arg0 : i32, i32
  }
}

</mosaic_0001>

<llo_original>
// kernel: _mro_first_pallas.1
$region0: #{_mro_first_pallas.1}
  #allocation0 [shape = 'u32[]', space=smem, size = 0x4, offset = 0x4, fixed_abs, tag = 'smem constant byte address 0x4 - core index']
  #allocation1 [shape = 'u32[144,128]{1,0:T(1,128)}', space=vmem, size = 0x12000, scoped, tag = 'internal scratch']
  %s0 = inlined_call_operand.vmem [shape: bf16[384,8], index: 0, kind: input, shape index: {}]
  %s1 = inlined_call_operand.vmem [shape: bf16[128,384], index: 1, kind: input, shape index: {}]
  %s2 = inlined_call_operand.vmem [shape: bf16[128,128], index: 2, kind: input, shape index: {}]
  %s3 = inlined_call_operand.vmem [shape: bf16[128,128], index: 3, kind: input, shape index: {}]
  %s4 = inlined_call_operand.vmem [shape: bf16[128,128], index: 4, kind: input, shape index: {}]
  %s5 = inlined_call_operand.vmem [shape: bf16[64,64], index: 5, kind: input, shape index: {}]
  %s6 = inlined_call_operand.vmem [shape: bf16[64,64], index: 6, kind: input, shape index: {}]
  %s7 = inlined_call_operand.vmem [shape: bf16[64,64], index: 7, kind: input, shape index: {}]
  %s8 = inlined_call_operand.vmem [shape: bf16[64,64], index: 8, kind: input, shape index: {}]
  %s9 = inlined_call_operand.vmem [shape: bf16[16,32], index: 9, kind: input, shape index: {}]
  %s10 = inlined_call_operand.vmem [shape: bf16[8,48], index: 10, kind: input, shape index: {}]
  %s11 = inlined_call_operand.vmem [shape: f32[128,10], index: 11, kind: input, shape index: {}]
  %s12 = inlined_call_operand.hbm [shape: f32[1,8], index: 12, kind: output, shape index: {}]
  %s13 = sld [smem:[#allocation0]]
  $region58: #{_mro_first_pallas.1} parent=0
    _
  %s15 = ssub.s32 1, %s13
  %s16 = scalar_select 0, %s15, %s13
  $region1: #{_mro_first_pallas.1} parent=0
    #allocation2 [shape = 'u8[512]{0}', space=vmem, size = 0x400, scoped, tag = 'output window, operand 0, single buffered']
    #allocation3 [shape = 's32[1]{0}', space=sflag, size = 0x4, scoped, tag = 'scoped memory for _mro_first_pallas.1']
    %17 = vsyncpa [#allocation3], 0
    // Predicated region
    $region2: #{_mro_first_pallas.1} parent=1 // pred_check
      _
    $region3: #{_mro_first_pallas.1} parent=1 // pred_check_branch
      %19 = sbr.rel (0) target = $region5
    $region4: #{_mro_first_pallas.1} parent=1 // pred_region
      _
    $region5: #{_mro_first_pallas.1} parent=1 // pred_fallthru
      _
    // Predicated region
    $region6: #{_mro_first_pallas.1} parent=1 // pred_check
      _
    $region7: #{_mro_first_pallas.1} parent=1 // pred_check_branch
      %21 = sbr.rel (0) target = $region9
    $region8: #{_mro_first_pallas.1} parent=1 // pred_region
      _
    $region9: #{_mro_first_pallas.1} parent=1 // pred_fallthru
      _
    // Predicated region
    $region10: #{_mro_first_pallas.1} parent=1 // pred_check
      _
    $region11: #{_mro_first_pallas.1} parent=1 // pred_check_branch
      %23 = sbr.rel (0) target = $region13
    $region12: #{_mro_first_pallas.1} parent=1 // pred_region
      _
    $region13: #{_mro_first_pallas.1} parent=1 // pred_fallthru
      _
    // Predicated region
    $region14: #{_mro_first_pallas.1} parent=1 // pred_check
      _
    $region15: #{_mro_first_pallas.1} parent=1 // pred_check_branch
      %25 = sbr.rel (0) target = $region17
    $region16: #{_mro_first_pallas.1} parent=1 // pred_region
      _
    $region17: #{_mro_first_pallas.1} parent=1 // pred_fallthru
      _
    // Predicated region
    $region18: #{_mro_first_pallas.1} parent=1 // pred_check
      _
    $region19: #{_mro_first_pallas.1} parent=1 // pred_check_branch
      %27 = sbr.rel (0) target = $region21
    $region20: #{_mro_first_pallas.1} parent=1 // pred_region
      _
    $region21: #{_mro_first_pallas.1} parent=1 // pred_fallthru
      _
    // Predicated region
    $region22: #{_mro_first_pallas.1} parent=1 // pred_check
      _
    $region23: #{_mro_first_pallas.1} parent=1 // pred_check_branch
      %29 = sbr.rel (0) target = $region25
    $region24: #{_mro_first_pallas.1} parent=1 // pred_region
      _
    $region25: #{_mro_first_pallas.1} parent=1 // pred_fallthru
      _
    // Predicated region
    $region26: #{_mro_first_pallas.1} parent=1 // pred_check
      _
    $region27: #{_mro_first_pallas.1} parent=1 // pred_check_branch
      %31 = sbr.rel (0) target = $region29
    $region28: #{_mro_first_pallas.1} parent=1 // pred_region
      _
    $region29: #{_mro_first_pallas.1} parent=1 // pred_fallthru
      _
    // Predicated region
    $region30: #{_mro_first_pallas.1} parent=1 // pred_check
      _
    $region31: #{_mro_first_pallas.1} parent=1 // pred_check_branch
      %33 = sbr.rel (0) target = $region33
    $region32: #{_mro_first_pallas.1} parent=1 // pred_region
      _
    $region33: #{_mro_first_pallas.1} parent=1 // pred_fallthru
      _
    // Predicated region
    $region34: #{_mro_first_pallas.1} parent=1 // pred_check
      _
    $region35: #{_mro_first_pallas.1} parent=1 // pred_check_branch
      %35 = sbr.rel (0) target = $region37
    $region36: #{_mro_first_pallas.1} parent=1 // pred_region
      _
    $region37: #{_mro_first_pallas.1} parent=1 // pred_fallthru
      _
    // Predicated region
    $region38: #{_mro_first_pallas.1} parent=1 // pred_check
      _
    $region39: #{_mro_first_pallas.1} parent=1 // pred_check_branch
      %37 = sbr.rel (0) target = $region41
    $region40: #{_mro_first_pallas.1} parent=1 // pred_region
      _
    $region41: #{_mro_first_pallas.1} parent=1 // pred_fallthru
      _
    // Predicated region
    $region42: #{_mro_first_pallas.1} parent=1 // pred_check
      _
    $region43: #{_mro_first_pallas.1} parent=1 // pred_check_branch
      %39 = sbr.rel (0) target = $region45
    $region44: #{_mro_first_pallas.1} parent=1 // pred_region
      _
    $region45: #{_mro_first_pallas.1} parent=1 // pred_fallthru
      _
    // Predicated region
    $region46: #{_mro_first_pallas.1} parent=1 // pred_check
      _
    $region47: #{_mro_first_pallas.1} parent=1 // pred_check_branch
      %41 = sbr.rel (0) target = $region49
    $region48: #{_mro_first_pallas.1} parent=1 // pred_region
      _
    $region49: #{_mro_first_pallas.1} parent=1 // pred_fallthru
      _
    %v43 = vld [vmem:[%s0] sm:$0xf]
    %v44 = vld [vmem:[%s0 + $0x4] sm:$0xf]
    %v45 = vld [vmem:[%s0 + $0x8] sm:$0xf]
    %v46 = vld [vmem:[%s0 + $0xc] sm:$0xf]
    %v47 = vld [vmem:[%s0 + $0x10] sm:$0xf]
    %v48 = vld [vmem:[%s0 + $0x14] sm:$0xf]
    %v49 = vld [vmem:[%s0 + $0x18] sm:$0xf]
    %v50 = vld [vmem:[%s0 + $0x1c] sm:$0xf]
    %v51 = vld [vmem:[%s0 + $0x20] sm:$0xf]
    %v52 = vld [vmem:[%s0 + $0x24] sm:$0xf]
    %v53 = vld [vmem:[%s0 + $0x28] sm:$0xf]
    %v54 = vld [vmem:[%s0 + $0x2c] sm:$0xf]
    %v55 = vld [vmem:[%s0 + $0x30] sm:$0xf]
    %v56 = vld [vmem:[%s0 + $0x34] sm:$0xf]
    %v57 = vld [vmem:[%s0 + $0x38] sm:$0xf]
    %v58 = vld [vmem:[%s0 + $0x3c] sm:$0xf]
    %v59 = vld [vmem:[%s0 + $0x40] sm:$0xf]
    %v60 = vld [vmem:[%s0 + $0x44] sm:$0xf]
    %v61 = vld [vmem:[%s0 + $0x48] sm:$0xf]
    %v62 = vld [vmem:[%s0 + $0x4c] sm:$0xf]
    %v63 = vld [vmem:[%s0 + $0x50] sm:$0xf]
    %v64 = vld [vmem:[%s0 + $0x54] sm:$0xf]
    %v65 = vld [vmem:[%s0 + $0x58] sm:$0xf]
    %v66 = vld [vmem:[%s0 + $0x5c] sm:$0xf]
    %v67 = vld [vmem:[%s0 + $0x60] sm:$0xf]
    %v68 = vld [vmem:[%s0 + $0x64] sm:$0xf]
    %v69 = vld [vmem:[%s0 + $0x68] sm:$0xf]
    %v70 = vld [vmem:[%s0 + $0x6c] sm:$0xf]
    %v71 = vld [vmem:[%s0 + $0x70] sm:$0xf]
    %v72 = vld [vmem:[%s0 + $0x74] sm:$0xf]
    %v73 = vld [vmem:[%s0 + $0x78] sm:$0xf]
    %v74 = vld [vmem:[%s0 + $0x7c] sm:$0xf]
    %v75 = vld [vmem:[%s0 + $0x80] sm:$0xf]
    %v76 = vld [vmem:[%s0 + $0x84] sm:$0xf]
    %v77 = vld [vmem:[%s0 + $0x88] sm:$0xf]
    %v78 = vld [vmem:[%s0 + $0x8c] sm:$0xf]
    %v79 = vld [vmem:[%s0 + $0x90] sm:$0xf]
    %v80 = vld [vmem:[%s0 + $0x94] sm:$0xf]
    %v81 = vld [vmem:[%s0 + $0x98] sm:$0xf]
    %v82 = vld [vmem:[%s0 + $0x9c] sm:$0xf]
    %v83 = vld [vmem:[%s0 + $0xa0] sm:$0xf]
    %v84 = vld [vmem:[%s0 + $0xa4] sm:$0xf]
    %v85 = vld [vmem:[%s0 + $0xa8] sm:$0xf]
    %v86 = vld [vmem:[%s0 + $0xac] sm:$0xf]
    %v87 = vld [vmem:[%s0 + $0xb0] sm:$0xf]
    %v88 = vld [vmem:[%s0 + $0xb4] sm:$0xf]
    %v89 = vld [vmem:[%s0 + $0xb8] sm:$0xf]
    %v90 = vld [vmem:[%s0 + $0xbc] sm:$0xf]
    %v91 = vld [vmem:[%s1] sm:$0xff]
    %v92 = vld [vmem:[%s1 + $0x8] sm:$0xf]
    %v93 = vld [vmem:[%s1 + $0xc] sm:$0xff]
    %v94 = vld [vmem:[%s1 + $0x14] sm:$0xf]
    %v95 = vld [vmem:[%s1 + $0x18] sm:$0xff]
    %v96 = vld [vmem:[%s1 + $0x20] sm:$0xf]
    %v97 = vld [vmem:[%s1 + $0x24] sm:$0xff]
    %v98 = vld [vmem:[%s1 + $0x2c] sm:$0xf]
    %v99 = vld [vmem:[%s1 + $0x30] sm:$0xff]
    %v100 = vld [vmem:[%s1 + $0x38] sm:$0xf]
    %v101 = vld [vmem:[%s1 + $0x3c] sm:$0xff]
    %v102 = vld [vmem:[%s1 + $0x44] sm:$0xf]
    %v103 = vld [vmem:[%s1 + $0x48] sm:$0xff]
    %v104 = vld [vmem:[%s1 + $0x50] sm:$0xf]
    %v105 = vld [vmem:[%s1 + $0x54] sm:$0xff]
    %v106 = vld [vmem:[%s1 + $0x5c] sm:$0xf]
    %v107 = vld [vmem:[%s1 + $0x60] sm:$0xff]
    %v108 = vld [vmem:[%s1 + $0x68] sm:$0xf]
    %v109 = vld [vmem:[%s1 + $0x6c] sm:$0xff]
    %v110 = vld [vmem:[%s1 + $0x74] sm:$0xf]
    %v111 = vld [vmem:[%s1 + $0x78] sm:$0xff]
    %v112 = vld [vmem:[%s1 + $0x80] sm:$0xf]
    %v113 = vld [vmem:[%s1 + $0x84] sm:$0xff]
    %v114 = vld [vmem:[%s1 + $0x8c] sm:$0xf]
    %v115 = vld [vmem:[%s1 + $0x90] sm:$0xff]
    %v116 = vld [vmem:[%s1 + $0x98] sm:$0xf]
    %v117 = vld [vmem:[%s1 + $0x9c] sm:$0xff]
    %v118 = vld [vmem:[%s1 + $0xa4] sm:$0xf]
    %v119 = vld [vmem:[%s1 + $0xa8] sm:$0xff]
    %v120 = vld [vmem:[%s1 + $0xb0] sm:$0xf]
    %v121 = vld [vmem:[%s1 + $0xb4] sm:$0xff]
    %v122 = vld [vmem:[%s1 + $0xbc] sm:$0xf]
    %v123 = vld [vmem:[%s11] sm:$0xff]
    %v124 = vld [vmem:[%s11 + $0x8] sm:$0xff]
    %v125 = vld [vmem:[%s11 + $0x10] sm:$0xff]
    %v126 = vld [vmem:[%s11 + $0x18] sm:$0xff]
    %v127 = vld [vmem:[%s11 + $0x20] sm:$0xff]
    %v128 = vld [vmem:[%s11 + $0x28] sm:$0xff]
    %v129 = vld [vmem:[%s11 + $0x30] sm:$0xff]
    %v130 = vld [vmem:[%s11 + $0x38] sm:$0xff]
    %v131 = vld [vmem:[%s11 + $0x40] sm:$0xff]
    %v132 = vld [vmem:[%s11 + $0x48] sm:$0xff]
    %v133 = vld [vmem:[%s11 + $0x50] sm:$0xff]
    %v134 = vld [vmem:[%s11 + $0x58] sm:$0xff]
    %v135 = vld [vmem:[%s11 + $0x60] sm:$0xff]
    %v136 = vld [vmem:[%s11 + $0x68] sm:$0xff]
    %v137 = vld [vmem:[%s11 + $0x70] sm:$0xff]
    %v138 = vld [vmem:[%s11 + $0x78] sm:$0xff]
    %140 = vset.pattern.permute.xlu0 0
    %141 = vperm.xlu0 %140, %v123
    %v142 = vpop.permute.xlu0 %141
    %145 = vset.pattern.permute.xlu0 0
    %146 = vperm.xlu0 %145, %v124
    %v147 = vpop.permute.xlu0 %146
    %150 = vset.pattern.permute.xlu0 0
    %151 = vperm.xlu0 %150, %v125
    %v152 = vpop.permute.xlu0 %151
    %155 = vset.pattern.permute.xlu0 0
    %156 = vperm.xlu0 %155, %v126
    %v157 = vpop.permute.xlu0 %156
    %160 = vset.pattern.permute.xlu0 0
    %161 = vperm.xlu0 %160, %v127
    %v162 = vpop.permute.xlu0 %161
    %165 = vset.pattern.permute.xlu0 0
    %166 = vperm.xlu0 %165, %v128
    %v167 = vpop.permute.xlu0 %166
    %170 = vset.pattern.permute.xlu0 0
    %171 = vperm.xlu0 %170, %v129
    %v172 = vpop.permute.xlu0 %171
    %175 = vset.pattern.permute.xlu0 0
    %176 = vperm.xlu0 %175, %v130
    %v177 = vpop.permute.xlu0 %176
    %180 = vset.pattern.permute.xlu0 0
    %181 = vperm.xlu0 %180, %v131
    %v182 = vpop.permute.xlu0 %181
    %185 = vset.pattern.permute.xlu0 0
    %186 = vperm.xlu0 %185, %v132
    %v187 = vpop.permute.xlu0 %186
    %190 = vset.pattern.permute.xlu0 0
    %191 = vperm.xlu0 %190, %v133
    %v192 = vpop.permute.xlu0 %191
    %195 = vset.pattern.permute.xlu0 0
    %196 = vperm.xlu0 %195, %v134
    %v197 = vpop.permute.xlu0 %196
    %200 = vset.pattern.permute.xlu0 0
    %201 = vperm.xlu0 %200, %v135
    %v202 = vpop.permute.xlu0 %201
    %205 = vset.pattern.permute.xlu0 0
    %206 = vperm.xlu0 %205, %v136
    %v207 = vpop.permute.xlu0 %206
    %210 = vset.pattern.permute.xlu0 0
    %211 = vperm.xlu0 %210, %v137
    %v212 = vpop.permute.xlu0 %211
    %215 = vset.pattern.permute.xlu0 0
    %216 = vperm.xlu0 %215, %v138
    %v217 = vpop.permute.xlu0 %216
    %v251 = vunpack.c.l.b16 %v91
    %v252 = vunpack.c.h.b16 %v91
    %v253 = vunpack.c.l.b16 %v92
    %v254 = vunpack.c.l.b16 %v93
    %v255 = vunpack.c.h.b16 %v93
    %v256 = vunpack.c.l.b16 %v94
    %v257 = vunpack.c.l.b16 %v95
    %v258 = vunpack.c.h.b16 %v95
    %v259 = vunpack.c.l.b16 %v96
    %v260 = vunpack.c.l.b16 %v97
    %v261 = vunpack.c.h.b16 %v97
    %v262 = vunpack.c.l.b16 %v98
    %v263 = vunpack.c.l.b16 %v99
    %v264 = vunpack.c.h.b16 %v99
    %v265 = vunpack.c.l.b16 %v100
    %v266 = vunpack.c.l.b16 %v101
    %v267 = vunpack.c.h.b16 %v101
    %v268 = vunpack.c.l.b16 %v102
    %v269 = vunpack.c.l.b16 %v103
    %v270 = vunpack.c.h.b16 %v103
    %v271 = vunpack.c.l.b16 %v104
    %v272 = vunpack.c.l.b16 %v105
    %v273 = vunpack.c.h.b16 %v105
    %v274 = vunpack.c.l.b16 %v106
    %v275 = vunpack.c.l.b16 %v107
    %v276 = vunpack.c.h.b16 %v107
    %v277 = vunpack.c.l.b16 %v108
    %v278 = vunpack.c.l.b16 %v109
    %v279 = vunpack.c.h.b16 %v109
    %v280 = vunpack.c.l.b16 %v110
    %v281 = vunpack.c.l.b16 %v111
    %v282 = vunpack.c.h.b16 %v111
    %v283 = vunpack.c.l.b16 %v112
    %v284 = vunpack.c.l.b16 %v113
    %v285 = vunpack.c.h.b16 %v113
    %v286 = vunpack.c.l.b16 %v114
    %v287 = vunpack.c.l.b16 %v115
    %v288 = vunpack.c.h.b16 %v115
    %v289 = vunpack.c.l.b16 %v116
    %v290 = vunpack.c.l.b16 %v117
    %v291 = vunpack.c.h.b16 %v117
    %v292 = vunpack.c.l.b16 %v118
    %v293 = vunpack.c.l.b16 %v119
    %v294 = vunpack.c.h.b16 %v119
    %v295 = vunpack.c.l.b16 %v120
    %v296 = vunpack.c.l.b16 %v121
    %v297 = vunpack.c.h.b16 %v121
    %v298 = vunpack.c.l.b16 %v122
    %v299 = vpack.c.b16 %v254, %v251
    %v300 = vpack.c.b16 %v255, %v252
    %v301 = vpack.c.b16 %v256, %v253
    %v302 = vpack.c.b16 %v260, %v257
    %v303 = vpack.c.b16 %v261, %v258
    %v304 = vpack.c.b16 %v262, %v259
    %v305 = vpack.c.b16 %v266, %v263
    %v306 = vpack.c.b16 %v267, %v264
    %v307 = vpack.c.b16 %v268, %v265
    %v308 = vpack.c.b16 %v272, %v269
    %v309 = vpack.c.b16 %v273, %v270
    %v310 = vpack.c.b16 %v274, %v271
    %v311 = vpack.c.b16 %v278, %v275
    %v312 = vpack.c.b16 %v279, %v276
    %v313 = vpack.c.b16 %v280, %v277
    %v314 = vpack.c.b16 %v284, %v281
    %v315 = vpack.c.b16 %v285, %v282
    %v316 = vpack.c.b16 %v286, %v283
    %v317 = vpack.c.b16 %v290, %v287
    %v318 = vpack.c.b16 %v291, %v288
    %v319 = vpack.c.b16 %v292, %v289
    %v320 = vpack.c.b16 %v296, %v293
    %v321 = vpack.c.b16 %v297, %v294
    %v322 = vpack.c.b16 %v298, %v295
    %v395 = vunpack.c.l.b16 %v43
    %v396 = vunpack.c.l.b16 %v44
    %v397 = vunpack.c.l.b16 %v45
    %v398 = vunpack.c.l.b16 %v46
    %v399 = vunpack.c.l.b16 %v47
    %v400 = vunpack.c.l.b16 %v48
    %v401 = vunpack.c.l.b16 %v49
    %v402 = vunpack.c.l.b16 %v50
    %v403 = vunpack.c.l.b16 %v51
    %v404 = vunpack.c.l.b16 %v52
    %v405 = vunpack.c.l.b16 %v53
    %v406 = vunpack.c.l.b16 %v54
    %v407 = vunpack.c.l.b16 %v55
    %v408 = vunpack.c.l.b16 %v56
    %v409 = vunpack.c.l.b16 %v57
    %v410 = vunpack.c.l.b16 %v58
    %v411 = vunpack.c.l.b16 %v59
    %v412 = vunpack.c.l.b16 %v60
    %v413 = vunpack.c.l.b16 %v61
    %v414 = vunpack.c.l.b16 %v62
    %v415 = vunpack.c.l.b16 %v63
    %v416 = vunpack.c.l.b16 %v64
    %v417 = vunpack.c.l.b16 %v65
    %v418 = vunpack.c.l.b16 %v66
    %v419 = vunpack.c.l.b16 %v67
    %v420 = vunpack.c.l.b16 %v68
    %v421 = vunpack.c.l.b16 %v69
    %v422 = vunpack.c.l.b16 %v70
    %v423 = vunpack.c.l.b16 %v71
    %v424 = vunpack.c.l.b16 %v72
    %v425 = vunpack.c.l.b16 %v73
    %v426 = vunpack.c.l.b16 %v74
    %v427 = vunpack.c.l.b16 %v75
    %v428 = vunpack.c.l.b16 %v76
    %v429 = vunpack.c.l.b16 %v77
    %v430 = vunpack.c.l.b16 %v78
    %v431 = vunpack.c.l.b16 %v79
    %v432 = vunpack.c.l.b16 %v80
    %v433 = vunpack.c.l.b16 %v81
    %v434 = vunpack.c.l.b16 %v82
    %v435 = vunpack.c.l.b16 %v83
    %v436 = vunpack.c.l.b16 %v84
    %v437 = vunpack.c.l.b16 %v85
    %v438 = vunpack.c.l.b16 %v86
    %v439 = vunpack.c.l.b16 %v87
    %v440 = vunpack.c.l.b16 %v88
    %v441 = vunpack.c.l.b16 %v89
    %v442 = vunpack.c.l.b16 %v90
    %v443 = vpack.c.b16 %v396, %v395
    %v444 = vpack.c.b16 %v398, %v397
    %v445 = vpack.c.b16 %v400, %v399
    %v446 = vpack.c.b16 %v402, %v401
    %v447 = vpack.c.b16 %v404, %v403
    %v448 = vpack.c.b16 %v406, %v405
    %v449 = vpack.c.b16 %v408, %v407
    %v450 = vpack.c.b16 %v410, %v409
    %v451 = vpack.c.b16 %v412, %v411
    %v452 = vpack.c.b16 %v414, %v413
    %v453 = vpack.c.b16 %v416, %v415
    %v454 = vpack.c.b16 %v418, %v417
    %v455 = vpack.c.b16 %v420, %v419
    %v456 = vpack.c.b16 %v422, %v421
    %v457 = vpack.c.b16 %v424, %v423
    %v458 = vpack.c.b16 %v426, %v425
    %v459 = vpack.c.b16 %v428, %v427
    %v460 = vpack.c.b16 %v430, %v429
    %v461 = vpack.c.b16 %v432, %v431
    %v462 = vpack.c.b16 %v434, %v433
    %v463 = vpack.c.b16 %v436, %v435
    %v464 = vpack.c.b16 %v438, %v437
    %v465 = vpack.c.b16 %v440, %v439
    %v466 = vpack.c.b16 %v442, %v441
    %491 = vmatprep.subr.bf16.mxu0 0
    %492 = vmatpush1.bf16.msra.mxu0 %v443
    %493 = vmatprep.subr.bf16.mxu0 0
    %494 = vmatpush1.bf16.msra.mxu0 %v444
    %495 = vmatprep.subr.bf16.mxu0 0
    %496 = vmatpush1.bf16.msra.mxu0 %v445
    %497 = vmatprep.subr.bf16.mxu0 0
    %498 = vmatpush1.bf16.msra.mxu0 %v446
    %499 = vmatprep.subr.bf16.mxu0 0
    %500 = vmatpush1.bf16.msra.mxu0 %v447
    %501 = vmatprep.subr.bf16.mxu0 0
    %502 = vmatpush1.bf16.msra.mxu0 %v448
    %503 = vmatprep.subr.bf16.mxu0 0
    %504 = vmatpush1.bf16.msra.mxu0 %v449
    %505 = vmatprep.subr.bf16.mxu0 0
    %506 = vmatpush1.bf16.msra.mxu0 %v450
    %507 = vmatprep.subr.bf16.mxu0 0
    %508 = vmatpush1.bf16.msra.mxu0 %v451
    %509 = vmatprep.subr.bf16.mxu0 0
    %510 = vmatpush1.bf16.msra.mxu0 %v452
    %511 = vmatprep.subr.bf16.mxu0 0
    %512 = vmatpush1.bf16.msra.mxu0 %v453
    %513 = vmatprep.subr.bf16.mxu0 0
    %514 = vmatpush1.bf16.msra.mxu0 %v454
    %515 = vmatprep.subr.bf16.mxu0 0
    %516 = vmatpush1.bf16.msra.mxu0 %v455
    %517 = vmatprep.subr.bf16.mxu0 0
    %518 = vmatpush1.bf16.msra.mxu0 %v456
    %519 = vmatprep.subr.bf16.mxu0 0
    %520 = vmatpush1.bf16.msra.mxu0 %v457
    %521 = vmatprep.subr.bf16.mxu0 0
    %522 = vmatpush1.bf16.msra.mxu0 %v458
    %523 = vmatprep.mubr.bf16.mxu0 %v300
    %524 = vmatmul.mubr.bf16.gmra.mrb[0].mxu0 %v299
    %v525 = vpop.f32.mrb[0].mxu0
    %v526 = vadd.f32 %v142, %v525
    %v527 = vpop.f32.mrb[0].mxu0
    %v528 = vpop.f32.mrb[0].mxu0
    %v529 = vadd.f32 %v147, %v528
    %v530 = vpop.f32.mrb[0].mxu0
    %531 = vmatprep.mubr.bf16.mxu0 %v303
    %532 = vmatmul.mubr.bf16.gmra.mrb[0].mxu0 %v302
    %v533 = vpop.f32.mrb[0].mxu0
    %v534 = vadd.f32 %v152, %v533
    %v535 = vpop.f32.mrb[0].mxu0
    %v536 = vpop.f32.mrb[0].mxu0
    %v537 = vadd.f32 %v157, %v536
    %v538 = vpop.f32.mrb[0].mxu0
    %539 = vmatprep.mubr.bf16.mxu0 %v306
    %540 = vmatmul.mubr.bf16.gmra.mrb[0].mxu0 %v305
    %v541 = vpop.f32.mrb[0].mxu0
    %v542 = vadd.f32 %v162, %v541
    %v543 = vpop.f32.mrb[0].mxu0
    %v544 = vpop.f32.mrb[0].mxu0
    %v545 = vadd.f32 %v167, %v544
    %v546 = vpop.f32.mrb[0].mxu0
    %547 = vmatprep.mubr.bf16.mxu0 %v309
    %548 = vmatmul.mubr.bf16.gmra.mrb[0].mxu0 %v308
    %v549 = vpop.f32.mrb[0].mxu0
    %v550 = vadd.f32 %v172, %v549
    %v551 = vpop.f32.mrb[0].mxu0
    %v552 = vpop.f32.mrb[0].mxu0
    %v553 = vadd.f32 %v177, %v552
    %v554 = vpop.f32.mrb[0].mxu0
    %555 = vmatprep.mubr.bf16.mxu0 %v312
    %556 = vmatmul.mubr.bf16.gmra.mrb[0].mxu0 %v311
    %v557 = vpop.f32.mrb[0].mxu0
    %v558 = vadd.f32 %v182, %v557
    %v559 = vpop.f32.mrb[0].mxu0
    %v560 = vpop.f32.mrb[0].mxu0
    %v561 = vadd.f32 %v187, %v560
    %v562 = vpop.f32.mrb[0].mxu0
    %563 = vmatprep.mubr.bf16.mxu0 %v315
    %564 = vmatmul.mubr.bf16.gmra.mrb[0].mxu0 %v314
    %v565 = vpop.f32.mrb[0].mxu0
    %v566 = vadd.f32 %v192, %v565
    %v567 = vpop.f32.mrb[0].mxu0
    %v568 = vpop.f32.mrb[0].mxu0
    %v569 = vadd.f32 %v197, %v568
    %v570 = vpop.f32.mrb[0].mxu0
    %571 = vmatprep.mubr.bf16.mxu0 %v318
    %572 = vmatmul.mubr.bf16.gmra.mrb[0].mxu0 %v317
    %v573 = vpop.f32.mrb[0].mxu0
    %v574 = vadd.f32 %v202, %v573
    %v575 = vpop.f32.mrb[0].mxu0
    %v576 = vpop.f32.mrb[0].mxu0
    %v577 = vadd.f32 %v207, %v576
    %v578 = vpop.f32.mrb[0].mxu0
    %579 = vmatprep.mubr.bf16.mxu0 %v321
    %580 = vmatmul.mubr.bf16.gmra.mrb[0].mxu0 %v320
    %v581 = vpop.f32.mrb[0].mxu0
    %v582 = vadd.f32 %v212, %v581
    %v583 = vpop.f32.mrb[0].mxu0
    %v584 = vpop.f32.mrb[0].mxu0
    %v585 = vadd.f32 %v217, %v584
    %v586 = vpop.f32.mrb[0].mxu0
    %587 = vdwg.mxu0
    %588 = vmatprep.subr.bf16.mxu0 0
    %589 = vmatpush1.bf16.msra.mxu0 %v459
    %590 = vmatprep.subr.bf16.mxu0 0
    %591 = vmatpush1.bf16.msra.mxu0 %v460
    %592 = vmatprep.subr.bf16.mxu0 0
    %593 = vmatpush1.bf16.msra.mxu0 %v461
    %594 = vmatprep.subr.bf16.mxu0 0
    %595 = vmatpush1.bf16.msra.mxu0 %v462
    %596 = vmatprep.subr.bf16.mxu0 0
    %597 = vmatpush1.bf16.msra.mxu0 %v463
    %598 = vmatprep.subr.bf16.mxu0 0
    %599 = vmatpush1.bf16.msra.mxu0 %v464
    %600 = vmatprep.subr.bf16.mxu0 0
    %601 = vmatpush1.bf16.msra.mxu0 %v465
    %602 = vmatprep.subr.bf16.mxu0 0
    %603 = vmatpush1.bf16.msra.mxu0 %v466
    %604 = vmatprep.subr.bf16.mxu0 0
    %605 = vmatpush1.bf16.msra.mxu0 0
    %606 = vmatprep.subr.bf16.mxu0 0
    %607 = vmatpush1.bf16.msra.mxu0 0
    %608 = vmatprep.subr.bf16.mxu0 0
    %609 = vmatpush1.bf16.msra.mxu0 0
    %610 = vmatprep.subr.bf16.mxu0 0
    %611 = vmatpush1.bf16.msra.mxu0 0
    %612 = vmatprep.subr.bf16.mxu0 0
    %613 = vmatpush1.bf16.msra.mxu0 0
    %614 = vmatprep.subr.bf16.mxu0 0
    %615 = vmatpush1.bf16.msra.mxu0 0
    %616 = vmatprep.subr.bf16.mxu0 0
    %617 = vmatpush1.bf16.msra.mxu0 0
    %618 = vmatprep.subr.bf16.mxu0 0
    %619 = vmatpush1.bf16.msra.mxu0 0
    %620 = vmatprep.mubr.bf16.mxu0 0
    %621 = vmatmul.mubr.bf16.gmra.mrb[0].mxu0 %v301
    %v622 = vpop.f32.mrb[0].mxu0
    %v623 = vadd.f32 %v526, %v622
    %v624 = vpop.f32.mrb[0].mxu0
    %v625 = vpop.f32.mrb[0].mxu0
    %v626 = vadd.f32 %v529, %v625
    %v627 = vpop.f32.mrb[0].mxu0
    %628 = vmatprep.mubr.bf16.mxu0 0
    %629 = vmatmul.mubr.bf16.gmra.mrb[0].mxu0 %v304
    %v630 = vpop.f32.mrb[0].mxu0
    %v631 = vadd.f32 %v534, %v630
    %v632 = vpop.f32.mrb[0].mxu0
    %v633 = vpop.f32.mrb[0].mxu0
    %v634 = vadd.f32 %v537, %v633
    %v635 = vpop.f32.mrb[0].mxu0
    %636 = vmatprep.mubr.bf16.mxu0 0
    %637 = vmatmul.mubr.bf16.gmra.mrb[0].mxu0 %v307
    %v638 = vpop.f32.mrb[0].mxu0
    %v639 = vadd.f32 %v542, %v638
    %v640 = vpop.f32.mrb[0].mxu0
    %v641 = vpop.f32.mrb[0].mxu0
    %v642 = vadd.f32 %v545, %v641
    %v643 = vpop.f32.mrb[0].mxu0
    %644 = vmatprep.mubr.bf16.mxu0 0
    %645 = vmatmul.mubr.bf16.gmra.mrb[0].mxu0 %v310
    %v646 = vpop.f32.mrb[0].mxu0
    %v647 = vadd.f32 %v550, %v646
    %v648 = vpop.f32.mrb[0].mxu0
    %v649 = vpop.f32.mrb[0].mxu0
    %v650 = vadd.f32 %v553, %v649
    %v651 = vpop.f32.mrb[0].mxu0
    %652 = vmatprep.mubr.bf16.mxu0 0
    %653 = vmatmul.mubr.bf16.gmra.mrb[0].mxu0 %v313
    %v654 = vpop.f32.mrb[0].mxu0
    %v655 = vadd.f32 %v558, %v654
    %v656 = vpop.f32.mrb[0].mxu0
    %v657 = vpop.f32.mrb[0].mxu0
    %v658 = vadd.f32 %v561, %v657
    %v659 = vpop.f32.mrb[0].mxu0
    %660 = vmatprep.mubr.bf16.mxu0 0
    %661 = vmatmul.mubr.bf16.gmra.mrb[0].mxu0 %v316
    %v662 = vpop.f32.mrb[0].mxu0
    %v663 = vadd.f32 %v566, %v662
    %v664 = vpop.f32.mrb[0].mxu0
    %v665 = vpop.f32.mrb[0].mxu0
    %v666 = vadd.f32 %v569, %v665
    %v667 = vpop.f32.mrb[0].mxu0
    %668 = vmatprep.mubr.bf16.mxu0 0
    %669 = vmatmul.mubr.bf16.gmra.mrb[0].mxu0 %v319
    %v670 = vpop.f32.mrb[0].mxu0
    %v671 = vadd.f32 %v574, %v670
    %v672 = vpop.f32.mrb[0].mxu0
    %v673 = vpop.f32.mrb[0].mxu0
    %v674 = vadd.f32 %v577, %v673
    %v675 = vpop.f32.mrb[0].mxu0
    %676 = vmatprep.mubr.bf16.mxu0 0
    %677 = vmatmul.mubr.bf16.gmra.mrb[0].mxu0 %v322
    %v678 = vpop.f32.mrb[0].mxu0
    %v679 = vadd.f32 %v582, %v678
    %v680 = vpop.f32.mrb[0].mxu0
    %v681 = vpop.f32.mrb[0].mxu0
    %v682 = vadd.f32 %v585, %v681
    %v683 = vpop.f32.mrb[0].mxu0
    %684 = vdwg.mxu0
    %v685 = vmax.f32 %v623, 0.0
    %v686 = vmax.f32 %v626, 0.0
    %v687 = vmax.f32 %v631, 0.0
    %v688 = vmax.f32 %v634, 0.0
    %v689 = vmax.f32 %v639, 0.0
    %v690 = vmax.f32 %v642, 0.0
    %v691 = vmax.f32 %v647, 0.0
    %v692 = vmax.f32 %v650, 0.0
    %v693 = vmax.f32 %v655, 0.0
    %v694 = vmax.f32 %v658, 0.0
    %v695 = vmax.f32 %v663, 0.0
    %v696 = vmax.f32 %v666, 0.0
    %v697 = vmax.f32 %v671, 0.0
    %v698 = vmax.f32 %v674, 0.0
    %v699 = vmax.f32 %v679, 0.0
    %v700 = vmax.f32 %v682, 0.0
    %v701 = vld [vmem:[%s2] sm:$0xf]
    %v702 = vld [vmem:[%s2 + $0x4] sm:$0xf]
    %v703 = vld [vmem:[%s2 + $0x8] sm:$0xf]
    %v704 = vld [vmem:[%s2 + $0xc] sm:$0xf]
    %v705 = vld [vmem:[%s2 + $0x10] sm:$0xf]
    %v706 = vld [vmem:[%s2 + $0x14] sm:$0xf]
    %v707 = vld [vmem:[%s2 + $0x18] sm:$0xf]
    %v708 = vld [vmem:[%s2 + $0x1c] sm:$0xf]
    %v709 = vld [vmem:[%s2 + $0x20] sm:$0xf]
    %v710 = vld [vmem:[%s2 + $0x24] sm:$0xf]
    %v711 = vld [vmem:[%s2 + $0x28] sm:$0xf]
    %v712 = vld [vmem:[%s2 + $0x2c] sm:$0xf]
    %v713 = vld [vmem:[%s2 + $0x30] sm:$0xf]
    %v714 = vld [vmem:[%s2 + $0x34] sm:$0xf]
    %v715 = vld [vmem:[%s2 + $0x38] sm:$0xf]
    %v716 = vld [vmem:[%s2 + $0x3c] sm:$0xf]
    %v717 = vpack.c.bf16 %v686, %v685
    %v718 = vpack.c.bf16 %v688, %v687
    %v719 = vpack.c.bf16 %v690, %v689
    %v720 = vpack.c.bf16 %v692, %v691
    %v721 = vpack.c.bf16 %v694, %v693
    %v722 = vpack.c.bf16 %v696, %v695
    %v723 = vpack.c.bf16 %v698, %v697
    %v724 = vpack.c.bf16 %v700, %v699
    %725 = vset.pattern.permute.xlu0 1
    %726 = vperm.xlu0 %725, %v123
    %v727 = vpop.permute.xlu0 %726
    %729 = vset.pattern.permute.xlu0 1
    %730 = vperm.xlu0 %729, %v124
    %v731 = vpop.permute.xlu0 %730
    %733 = vset.pattern.permute.xlu0 1
    %734 = vperm.xlu0 %733, %v125
    %v735 = vpop.permute.xlu0 %734
    %737 = vset.pattern.permute.xlu0 1
    %738 = vperm.xlu0 %737, %v126
    %v739 = vpop.permute.xlu0 %738
    %741 = vset.pattern.permute.xlu0 1
    %742 = vperm.xlu0 %741, %v127
    %v743 = vpop.permute.xlu0 %742
    %745 = vset.pattern.permute.xlu0 1
    %746 = vperm.xlu0 %745, %v128
    %v747 = vpop.permute.xlu0 %746
    %749 = vset.pattern.permute.xlu0 1
    %750 = vperm.xlu0 %749, %v129
    %v751 = vpop.permute.xlu0 %750
    %753 = vset.pattern.permute.xlu0 1
    %754 = vperm.xlu0 %753, %v130
    %v755 = vpop.permute.xlu0 %754
    %757 = vset.pattern.permute.xlu0 1
    %758 = vperm.xlu0 %757, %v131
    %v759 = vpop.permute.xlu0 %758
    %761 = vset.pattern.permute.xlu0 1
    %762 = vperm.xlu0 %761, %v132
    %v763 = vpop.permute.xlu0 %762
    %765 = vset.pattern.permute.xlu0 1
    %766 = vperm.xlu0 %765, %v133
    %v767 = vpop.permute.xlu0 %766
    %769 = vset.pattern.permute.xlu0 1
    %770 = vperm.xlu0 %769, %v134
    %v771 = vpop.permute.xlu0 %770
    %773 = vset.pattern.permute.xlu0 1
    %774 = vperm.xlu0 %773, %v135
    %v775 = vpop.permute.xlu0 %774
    %777 = vset.pattern.permute.xlu0 1
    %778 = vperm.xlu0 %777, %v136
    %v779 = vpop.permute.xlu0 %778
    %781 = vset.pattern.permute.xlu0 1
    %782 = vperm.xlu0 %781, %v137
    %v783 = vpop.permute.xlu0 %782
    %785 = vset.pattern.permute.xlu0 1
    %786 = vperm.xlu0 %785, %v138
    %v787 = vpop.permute.xlu0 %786
    %v805 = vunpack.c.l.b16 %v701
    %v806 = vunpack.c.l.b16 %v702
    %v807 = vunpack.c.l.b16 %v703
    %v808 = vunpack.c.l.b16 %v704
    %v809 = vunpack.c.l.b16 %v705
    %v810 = vunpack.c.l.b16 %v706
    %v811 = vunpack.c.l.b16 %v707
    %v812 = vunpack.c.l.b16 %v708
    %v813 = vunpack.c.l.b16 %v709
    %v814 = vunpack.c.l.b16 %v710
    %v815 = vunpack.c.l.b16 %v711
    %v816 = vunpack.c.l.b16 %v712
    %v817 = vunpack.c.l.b16 %v713
    %v818 = vunpack.c.l.b16 %v714
    %v819 = vunpack.c.l.b16 %v715
    %v820 = vunpack.c.l.b16 %v716
    %v821 = vpack.c.b16 %v806, %v805
    %v822 = vpack.c.b16 %v808, %v807
    %v823 = vpack.c.b16 %v810, %v809
    %v824 = vpack.c.b16 %v812, %v811
    %v825 = vpack.c.b16 %v814, %v813
    %v826 = vpack.c.b16 %v816, %v815
    %v827 = vpack.c.b16 %v818, %v817
    %v828 = vpack.c.b16 %v820, %v819
    %837 = vmatprep.subr.bf16.mxu0 0
    %838 = vmatpush1.bf16.msra.mxu0 %v717
    %839 = vmatprep.subr.bf16.mxu0 0
    %840 = vmatpush1.bf16.msra.mxu0 %v718
    %841 = vmatprep.subr.bf16.mxu0 0
    %842 = vmatpush1.bf16.msra.mxu0 %v719
    %843 = vmatprep.subr.bf16.mxu0 0
    %844 = vmatpush1.bf16.msra.mxu0 %v720
    %845 = vmatprep.subr.bf16.mxu0 0
    %846 = vmatpush1.bf16.msra.mxu0 %v721
    %847 = vmatprep.subr.bf16.mxu0 0
    %848 = vmatpush1.bf16.msra.mxu0 %v722
    %849 = vmatprep.subr.bf16.mxu0 0
    %850 = vmatpush1.bf16.msra.mxu0 %v723
    %851 = vmatprep.subr.bf16.mxu0 0
    %852 = vmatpush1.bf16.msra.mxu0 %v724
    %853 = vmatprep.subr.bf16.mxu0 0
    %854 = vmatpush1.bf16.msra.mxu0 0
    %855 = vmatprep.subr.bf16.mxu0 0
    %856 = vmatpush1.bf16.msra.mxu0 0
    %857 = vmatprep.subr.bf16.mxu0 0
    %858 = vmatpush1.bf16.msra.mxu0 0
    %859 = vmatprep.subr.bf16.mxu0 0
    %860 = vmatpush1.bf16.msra.mxu0 0
    %861 = vmatprep.subr.bf16.mxu0 0
    %862 = vmatpush1.bf16.msra.mxu0 0
    %863 = vmatprep.subr.bf16.mxu0 0
    %864 = vmatpush1.bf16.msra.mxu0 0
    %865 = vmatprep.subr.bf16.mxu0 0
    %866 = vmatpush1.bf16.msra.mxu0 0
    %867 = vmatprep.subr.bf16.mxu0 0
    %868 = vmatpush1.bf16.msra.mxu0 0
    %869 = vmatprep.mubr.bf16.mxu0 0
    %870 = vmatmul.mubr.bf16.gmra.mrb[0].mxu0 %v821
    %v871 = vpop.f32.mrb[0].mxu0
    %v872 = vadd.f32 %v727, %v871
    %v873 = vpop.f32.mrb[0].mxu0
    %v874 = vpop.f32.mrb[0].mxu0
    %v875 = vadd.f32 %v731, %v874
    %v876 = vpop.f32.mrb[0].mxu0
    %877 = vmatprep.mubr.bf16.mxu0 0
    %878 = vmatmul.mubr.bf16.gmra.mrb[0].mxu0 %v822
    %v879 = vpop.f32.mrb[0].mxu0
    %v880 = vadd.f32 %v735, %v879
    %v881 = vpop.f32.mrb[0].mxu0
    %v882 = vpop.f32.mrb[0].mxu0
    %v883 = vadd.f32 %v739, %v882
    %v884 = vpop.f32.mrb[0].mxu0
    %885 = vmatprep.mubr.bf16.mxu0 0
    %886 = vmatmul.mubr.bf16.gmra.mrb[0].mxu0 %v823
    %v887 = vpop.f32.mrb[0].mxu0
    %v888 = vadd.f32 %v743, %v887
    %v889 = vpop.f32.mrb[0].mxu0
    %v890 = vpop.f32.mrb[0].mxu0
    %v891 = vadd.f32 %v747, %v890
    %v892 = vpop.f32.mrb[0].mxu0
    %893 = vmatprep.mubr.bf16.mxu0 0
    %894 = vmatmul.mubr.bf16.gmra.mrb[0].mxu0 %v824
    %v895 = vpop.f32.mrb[0].mxu0
    %v896 = vadd.f32 %v751, %v895
    %v897 = vpop.f32.mrb[0].mxu0
    %v898 = vpop.f32.mrb[0].mxu0
    %v899 = vadd.f32 %v755, %v898
    %v900 = vpop.f32.mrb[0].mxu0
    %901 = vmatprep.mubr.bf16.mxu0 0
    %902 = vmatmul.mubr.bf16.gmra.mrb[0].mxu0 %v825
    %v903 = vpop.f32.mrb[0].mxu0
    %v904 = vadd.f32 %v759, %v903
    %v905 = vpop.f32.mrb[0].mxu0
    %v906 = vpop.f32.mrb[0].mxu0
    %v907 = vadd.f32 %v763, %v906
    %v908 = vpop.f32.mrb[0].mxu0
    %909 = vmatprep.mubr.bf16.mxu0 0
    %910 = vmatmul.mubr.bf16.gmra.mrb[0].mxu0 %v826
    %v911 = vpop.f32.mrb[0].mxu0
    %v912 = vadd.f32 %v767, %v911
    %v913 = vpop.f32.mrb[0].mxu0
    %v914 = vpop.f32.mrb[0].mxu0
    %v915 = vadd.f32 %v771, %v914
    %v916 = vpop.f32.mrb[0].mxu0
    %917 = vmatprep.mubr.bf16.mxu0 0
    %918 = vmatmul.mubr.bf16.gmra.mrb[0].mxu0 %v827
    %v919 = vpop.f32.mrb[0].mxu0
    %v920 = vadd.f32 %v775, %v919
    %v921 = vpop.f32.mrb[0].mxu0
    %v922 = vpop.f32.mrb[0].mxu0
    %v923 = vadd.f32 %v779, %v922
    %v924 = vpop.f32.mrb[0].mxu0
    %925 = vmatprep.mubr.bf16.mxu0 0
    %926 = vmatmul.mubr.bf16.gmra.mrb[0].mxu0 %v828
    %v927 = vpop.f32.mrb[0].mxu0
    %v928 = vadd.f32 %v783, %v927
    %v929 = vpop.f32.mrb[0].mxu0
    %v930 = vpop.f32.mrb[0].mxu0
    %v931 = vadd.f32 %v787, %v930
    %v932 = vpop.f32.mrb[0].mxu0
    %933 = vdwg.mxu0
    %v934 = vmax.f32 %v872, 0.0
    %v935 = vmax.f32 %v875, 0.0
    %v936 = vmax.f32 %v880, 0.0
    %v937 = vmax.f32 %v883, 0.0
    %v938 = vmax.f32 %v888, 0.0
    %v939 = vmax.f32 %v891, 0.0
    %v940 = vmax.f32 %v896, 0.0
    %v941 = vmax.f32 %v899, 0.0
    %v942 = vmax.f32 %v904, 0.0
    %v943 = vmax.f32 %v907, 0.0
    %v944 = vmax.f32 %v912, 0.0
    %v945 = vmax.f32 %v915, 0.0
    %v946 = vmax.f32 %v920, 0.0
    %v947 = vmax.f32 %v923, 0.0
    %v948 = vmax.f32 %v928, 0.0
    %v949 = vmax.f32 %v931, 0.0
    %v950 = vadd.f32 %v934, %v685
    %v951 = vadd.f32 %v935, %v686
    %v952 = vadd.f32 %v936, %v687
    %v953 = vadd.f32 %v937, %v688
    %v954 = vadd.f32 %v938, %v689
    %v955 = vadd.f32 %v939, %v690
    %v956 = vadd.f32 %v940, %v691
    %v957 = vadd.f32 %v941, %v692
    %v958 = vadd.f32 %v942, %v693
    %v959 = vadd.f32 %v943, %v694
    %v960 = vadd.f32 %v944, %v695
    %v961 = vadd.f32 %v945, %v696
    %v962 = vadd.f32 %v946, %v697
    %v963 = vadd.f32 %v947, %v698
    %v964 = vadd.f32 %v948, %v699
    %v965 = vadd.f32 %v949, %v700
    %v966 = vld [vmem:[%s3] sm:$0xf]
    %v967 = vld [vmem:[%s3 + $0x4] sm:$0xf]
    %v968 = vld [vmem:[%s3 + $0x8] sm:$0xf]
    %v969 = vld [vmem:[%s3 + $0xc] sm:$0xf]
    %v970 = vld [vmem:[%s3 + $0x10] sm:$0xf]
    %v971 = vld [vmem:[%s3 + $0x14] sm:$0xf]
    %v972 = vld [vmem:[%s3 + $0x18] sm:$0xf]
    %v973 = vld [vmem:[%s3 + $0x1c] sm:$0xf]
    %v974 = vld [vmem:[%s3 + $0x20] sm:$0xf]
    %v975 = vld [vmem:[%s3 + $0x24] sm:$0xf]
    %v976 = vld [vmem:[%s3 + $0x28] sm:$0xf]
    %v977 = vld [vmem:[%s3 + $0x2c] sm:$0xf]
    %v978 = vld [vmem:[%s3 + $0x30] sm:$0xf]
    %v979 = vld [vmem:[%s3 + $0x34] sm:$0xf]
    %v980 = vld [vmem:[%s3 + $0x38] sm:$0xf]
    %v981 = vld [vmem:[%s3 + $0x3c] sm:$0xf]
    %v982 = vpack.c.bf16 %v951, %v950
    %v983 = vpack.c.bf16 %v953, %v952
    %v984 = vpack.c.bf16 %v955, %v954
    %v985 = vpack.c.bf16 %v957, %v956
    %v986 = vpack.c.bf16 %v959, %v958
    %v987 = vpack.c.bf16 %v961, %v960
    %v988 = vpack.c.bf16 %v963, %v962
    %v989 = vpack.c.bf16 %v965, %v964
    %990 = vset.pattern.permute.xlu0 2
    %991 = vperm.xlu0 %990, %v123
    %v992 = vpop.permute.xlu0 %991
    %994 = vset.pattern.permute.xlu0 2
    %995 = vperm.xlu0 %994, %v124
    %v996 = vpop.permute.xlu0 %995
    %998 = vset.pattern.permute.xlu0 2
    %999 = vperm.xlu0 %998, %v125
    %v1000 = vpop.permute.xlu0 %999
    %1002 = vset.pattern.permute.xlu0 2
    %1003 = vperm.xlu0 %1002, %v126
    %v1004 = vpop.permute.xlu0 %1003
    %1006 = vset.pattern.permute.xlu0 2
    %1007 = vperm.xlu0 %1006, %v127
    %v1008 = vpop.permute.xlu0 %1007
    %1010 = vset.pattern.permute.xlu0 2
    %1011 = vperm.xlu0 %1010, %v128
    %v1012 = vpop.permute.xlu0 %1011
    %1014 = vset.pattern.permute.xlu0 2
    %1015 = vperm.xlu0 %1014, %v129
    %v1016 = vpop.permute.xlu0 %1015
    %1018 = vset.pattern.permute.xlu0 2
    %1019 = vperm.xlu0 %1018, %v130
    %v1020 = vpop.permute.xlu0 %1019
    %1022 = vset.pattern.permute.xlu0 2
    %1023 = vperm.xlu0 %1022, %v131
    %v1024 = vpop.permute.xlu0 %1023
    %1026 = vset.pattern.permute.xlu0 2
    %1027 = vperm.xlu0 %1026, %v132
    %v1028 = vpop.permute.xlu0 %1027
    %1030 = vset.pattern.permute.xlu0 2
    %1031 = vperm.xlu0 %1030, %v133
    %v1032 = vpop.permute.xlu0 %1031
    %1034 = vset.pattern.permute.xlu0 2
    %1035 = vperm.xlu0 %1034, %v134
    %v1036 = vpop.permute.xlu0 %1035
    %1038 = vset.pattern.permute.xlu0 2
    %1039 = vperm.xlu0 %1038, %v135
    %v1040 = vpop.permute.xlu0 %1039
    %1042 = vset.pattern.permute.xlu0 2
    %1043 = vperm.xlu0 %1042, %v136
    %v1044 = vpop.permute.xlu0 %1043
    %1046 = vset.pattern.permute.xlu0 2
    %1047 = vperm.xlu0 %1046, %v137
    %v1048 = vpop.permute.xlu0 %1047
    %1050 = vset.pattern.permute.xlu0 2
    %1051 = vperm.xlu0 %1050, %v138
    %v1052 = vpop.permute.xlu0 %1051
    %v1070 = vunpack.c.l.b16 %v966
    %v1071 = vunpack.c.l.b16 %v967
    %v1072 = vunpack.c.l.b16 %v968
    %v1073 = vunpack.c.l.b16 %v969
    %v1074 = vunpack.c.l.b16 %v970
    %v1075 = vunpack.c.l.b16 %v971
    %v1076 = vunpack.c.l.b16 %v972
    %v1077 = vunpack.c.l.b16 %v973
    %v1078 = vunpack.c.l.b16 %v974
    %v1079 = vunpack.c.l.b16 %v975
    %v1080 = vunpack.c.l.b16 %v976
    %v1081 = vunpack.c.l.b16 %v977
    %v1082 = vunpack.c.l.b16 %v978
    %v1083 = vunpack.c.l.b16 %v979
    %v1084 = vunpack.c.l.b16 %v980
    %v1085 = vunpack.c.l.b16 %v981
    %v1086 = vpack.c.b16 %v1071, %v1070
    %v1087 = vpack.c.b16 %v1073, %v1072
    %v1088 = vpack.c.b16 %v1075, %v1074
    %v1089 = vpack.c.b16 %v1077, %v1076
    %v1090 = vpack.c.b16 %v1079, %v1078
    %v1091 = vpack.c.b16 %v1081, %v1080
    %v1092 = vpack.c.b16 %v1083, %v1082
    %v1093 = vpack.c.b16 %v1085, %v1084
    %1102 = vmatprep.subr.bf16.mxu0 0
    %1103 = vmatpush1.bf16.msra.mxu0 %v982
    %1104 = vmatprep.subr.bf16.mxu0 0
    %1105 = vmatpush1.bf16.msra.mxu0 %v983
    %1106 = vmatprep.subr.bf16.mxu0 0
    %1107 = vmatpush1.bf16.msra.mxu0 %v984
    %1108 = vmatprep.subr.bf16.mxu0 0
    %1109 = vmatpush1.bf16.msra.mxu0 %v985
    %1110 = vmatprep.subr.bf16.mxu0 0
    %1111 = vmatpush1.bf16.msra.mxu0 %v986
    %1112 = vmatprep.subr.bf16.mxu0 0
    %1113 = vmatpush1.bf16.msra.mxu0 %v987
    %1114 = vmatprep.subr.bf16.mxu0 0
    %1115 = vmatpush1.bf16.msra.mxu0 %v988
    %1116 = vmatprep.subr.bf16.mxu0 0
    %1117 = vmatpush1.bf16.msra.mxu0 %v989
    %1118 = vmatprep.subr.bf16.mxu0 0
    %1119 = vmatpush1.bf16.msra.mxu0 0
    %1120 = vmatprep.subr.bf16.mxu0 0
    %1121 = vmatpush1.bf16.msra.mxu0 0
    %1122 = vmatprep.subr.bf16.mxu0 0
    %1123 = vmatpush1.bf16.msra.mxu0 0
    %1124 = vmatprep.subr.bf16.mxu0 0
    %1125 = vmatpush1.bf16.msra.mxu0 0
    %1126 = vmatprep.subr.bf16.mxu0 0
    %1127 = vmatpush1.bf16.msra.mxu0 0
    %1128 = vmatprep.subr.bf16.mxu0 0
    %1129 = vmatpush1.bf16.msra.mxu0 0
    %1130 = vmatprep.subr.bf16.mxu0 0
    %1131 = vmatpush1.bf16.msra.mxu0 0
    %1132 = vmatprep.subr.bf16.mxu0 0
    %1133 = vmatpush1.bf16.msra.mxu0 0
    %1134 = vmatprep.mubr.bf16.mxu0 0
    %1135 = vmatmul.mubr.bf16.gmra.mrb[0].mxu0 %v1086
    %v1136 = vpop.f32.mrb[0].mxu0
    %v1137 = vadd.f32 %v992, %v1136
    %v1138 = vpop.f32.mrb[0].mxu0
    %v1139 = vpop.f32.mrb[0].mxu0
    %v1140 = vadd.f32 %v996, %v1139
    %v1141 = vpop.f32.mrb[0].mxu0
    %1142 = vmatprep.mubr.bf16.mxu0 0
    %1143 = vmatmul.mubr.bf16.gmra.mrb[0].mxu0 %v1087
    %v1144 = vpop.f32.mrb[0].mxu0
    %v1145 = vadd.f32 %v1000, %v1144
    %v1146 = vpop.f32.mrb[0].mxu0
    %v1147 = vpop.f32.mrb[0].mxu0
    %v1148 = vadd.f32 %v1004, %v1147
    %v1149 = vpop.f32.mrb[0].mxu0
    %1150 = vmatprep.mubr.bf16.mxu0 0
    %1151 = vmatmul.mubr.bf16.gmra.mrb[0].mxu0 %v1088
    %v1152 = vpop.f32.mrb[0].mxu0
    %v1153 = vadd.f32 %v1008, %v1152
    %v1154 = vpop.f32.mrb[0].mxu0
    %v1155 = vpop.f32.mrb[0].mxu0
    %v1156 = vadd.f32 %v1012, %v1155
    %v1157 = vpop.f32.mrb[0].mxu0
    %1158 = vmatprep.mubr.bf16.mxu0 0
    %1159 = vmatmul.mubr.bf16.gmra.mrb[0].mxu0 %v1089
    %v1160 = vpop.f32.mrb[0].mxu0
    %v1161 = vadd.f32 %v1016, %v1160
    %v1162 = vpop.f32.mrb[0].mxu0
    %v1163 = vpop.f32.mrb[0].mxu0
    %v1164 = vadd.f32 %v1020, %v1163
    %v1165 = vpop.f32.mrb[0].mxu0
    %1166 = vmatprep.mubr.bf16.mxu0 0
    %1167 = vmatmul.mubr.bf16.gmra.mrb[0].mxu0 %v1090
    %v1168 = vpop.f32.mrb[0].mxu0
    %v1169 = vadd.f32 %v1024, %v1168
    %v1170 = vpop.f32.mrb[0].mxu0
    %v1171 = vpop.f32.mrb[0].mxu0
    %v1172 = vadd.f32 %v1028, %v1171
    %v1173 = vpop.f32.mrb[0].mxu0
    %1174 = vmatprep.mubr.bf16.mxu0 0
    %1175 = vmatmul.mubr.bf16.gmra.mrb[0].mxu0 %v1091
    %v1176 = vpop.f32.mrb[0].mxu0
    %v1177 = vadd.f32 %v1032, %v1176
    %v1178 = vpop.f32.mrb[0].mxu0
    %v1179 = vpop.f32.mrb[0].mxu0
    %v1180 = vadd.f32 %v1036, %v1179
    %v1181 = vpop.f32.mrb[0].mxu0
    %1182 = vmatprep.mubr.bf16.mxu0 0
    %1183 = vmatmul.mubr.bf16.gmra.mrb[0].mxu0 %v1092
    %v1184 = vpop.f32.mrb[0].mxu0
    %v1185 = vadd.f32 %v1040, %v1184
    %v1186 = vpop.f32.mrb[0].mxu0
    %v1187 = vpop.f32.mrb[0].mxu0
    %v1188 = vadd.f32 %v1044, %v1187
    %v1189 = vpop.f32.mrb[0].mxu0
    %1190 = vmatprep.mubr.bf16.mxu0 0
    %1191 = vmatmul.mubr.bf16.gmra.mrb[0].mxu0 %v1093
    %v1192 = vpop.f32.mrb[0].mxu0
    %v1193 = vadd.f32 %v1048, %v1192
    %v1194 = vpop.f32.mrb[0].mxu0
    %v1195 = vpop.f32.mrb[0].mxu0
    %v1196 = vadd.f32 %v1052, %v1195
    %v1197 = vpop.f32.mrb[0].mxu0
    %1198 = vdwg.mxu0
    %v1199 = vmax.f32 %v1137, 0.0
    %v1200 = vmax.f32 %v1140, 0.0
    %v1201 = vmax.f32 %v1145, 0.0
    %v1202 = vmax.f32 %v1148, 0.0
    %v1203 = vmax.f32 %v1153, 0.0
    %v1204 = vmax.f32 %v1156, 0.0
    %v1205 = vmax.f32 %v1161, 0.0
    %v1206 = vmax.f32 %v1164, 0.0
    %v1207 = vmax.f32 %v1169, 0.0
    %v1208 = vmax.f32 %v1172, 0.0
    %v1209 = vmax.f32 %v1177, 0.0
    %v1210 = vmax.f32 %v1180, 0.0
    %v1211 = vmax.f32 %v1185, 0.0
    %v1212 = vmax.f32 %v1188, 0.0
    %v1213 = vmax.f32 %v1193, 0.0
    %v1214 = vmax.f32 %v1196, 0.0
    %v1215 = vadd.f32 %v1199, %v950
    %v1216 = vadd.f32 %v1200, %v951
    %v1217 = vadd.f32 %v1201, %v952
    %v1218 = vadd.f32 %v1202, %v953
    %v1219 = vadd.f32 %v1203, %v954
    %v1220 = vadd.f32 %v1204, %v955
    %v1221 = vadd.f32 %v1205, %v956
    %v1222 = vadd.f32 %v1206, %v957
    %v1223 = vadd.f32 %v1207, %v958
    %v1224 = vadd.f32 %v1208, %v959
    %v1225 = vadd.f32 %v1209, %v960
    %v1226 = vadd.f32 %v1210, %v961
    %v1227 = vadd.f32 %v1211, %v962
    %v1228 = vadd.f32 %v1212, %v963
    %v1229 = vadd.f32 %v1213, %v964
    %v1230 = vadd.f32 %v1214, %v965
    %v1231 = vld [vmem:[%s4] sm:$0xf]
    %v1232 = vld [vmem:[%s4 + $0x4] sm:$0xf]
    %v1233 = vld [vmem:[%s4 + $0x8] sm:$0xf]
    %v1234 = vld [vmem:[%s4 + $0xc] sm:$0xf]
    %v1235 = vld [vmem:[%s4 + $0x10] sm:$0xf]
    %v1236 = vld [vmem:[%s4 + $0x14] sm:$0xf]
    %v1237 = vld [vmem:[%s4 + $0x18] sm:$0xf]
    %v1238 = vld [vmem:[%s4 + $0x1c] sm:$0xf]
    %v1239 = vld [vmem:[%s4 + $0x20] sm:$0xf]
    %v1240 = vld [vmem:[%s4 + $0x24] sm:$0xf]
    %v1241 = vld [vmem:[%s4 + $0x28] sm:$0xf]
    %v1242 = vld [vmem:[%s4 + $0x2c] sm:$0xf]
    %v1243 = vld [vmem:[%s4 + $0x30] sm:$0xf]
    %v1244 = vld [vmem:[%s4 + $0x34] sm:$0xf]
    %v1245 = vld [vmem:[%s4 + $0x38] sm:$0xf]
    %v1246 = vld [vmem:[%s4 + $0x3c] sm:$0xf]
    %v1247 = vpack.c.bf16 %v1216, %v1215
    %v1248 = vpack.c.bf16 %v1218, %v1217
    %v1249 = vpack.c.bf16 %v1220, %v1219
    %v1250 = vpack.c.bf16 %v1222, %v1221
    %v1251 = vpack.c.bf16 %v1224, %v1223
    %v1252 = vpack.c.bf16 %v1226, %v1225
    %v1253 = vpack.c.bf16 %v1228, %v1227
    %v1254 = vpack.c.bf16 %v1230, %v1229
    %v1271 = vunpack.c.l.b16 %v1231
    %v1272 = vunpack.c.l.b16 %v1232
    %v1273 = vunpack.c.l.b16 %v1233
    %v1274 = vunpack.c.l.b16 %v1234
    %v1275 = vunpack.c.l.b16 %v1235
    %v1276 = vunpack.c.l.b16 %v1236
    %v1277 = vunpack.c.l.b16 %v1237
    %v1278 = vunpack.c.l.b16 %v1238
    %v1279 = vunpack.c.l.b16 %v1239
    %v1280 = vunpack.c.l.b16 %v1240
    %v1281 = vunpack.c.l.b16 %v1241
    %v1282 = vunpack.c.l.b16 %v1242
    %v1283 = vunpack.c.l.b16 %v1243
    %v1284 = vunpack.c.l.b16 %v1244
    %v1285 = vunpack.c.l.b16 %v1245
    %v1286 = vunpack.c.l.b16 %v1246
    %v1287 = vpack.c.b16 %v1272, %v1271
    %v1288 = vpack.c.b16 %v1274, %v1273
    %v1289 = vpack.c.b16 %v1276, %v1275
    %v1290 = vpack.c.b16 %v1278, %v1277
    %v1291 = vpack.c.b16 %v1280, %v1279
    %v1292 = vpack.c.b16 %v1282, %v1281
    %v1293 = vpack.c.b16 %v1284, %v1283
    %v1294 = vpack.c.b16 %v1286, %v1285
    %1303 = vmatprep.subr.bf16.mxu0 0
    %1304 = vmatpush1.bf16.msra.mxu0 %v1247
    %1305 = vmatprep.subr.bf16.mxu0 0
    %1306 = vmatpush1.bf16.msra.mxu0 %v1248
    %1307 = vmatprep.subr.bf16.mxu0 0
    %1308 = vmatpush1.bf16.msra.mxu0 %v1249
    %1309 = vmatprep.subr.bf16.mxu0 0
    %1310 = vmatpush1.bf16.msra.mxu0 %v1250
    %1311 = vmatprep.subr.bf16.mxu0 0
    %1312 = vmatpush1.bf16.msra.mxu0 %v1251
    %1313 = vmatprep.subr.bf16.mxu0 0
    %1314 = vmatpush1.bf16.msra.mxu0 %v1252
    %1315 = vmatprep.subr.bf16.mxu0 0
    %1316 = vmatpush1.bf16.msra.mxu0 %v1253
    %1317 = vmatprep.subr.bf16.mxu0 0
    %1318 = vmatpush1.bf16.msra.mxu0 %v1254
    %1319 = vmatprep.subr.bf16.mxu0 0
    %1320 = vmatpush1.bf16.msra.mxu0 0
    %1321 = vmatprep.subr.bf16.mxu0 0
    %1322 = vmatpush1.bf16.msra.mxu0 0
    %1323 = vmatprep.subr.bf16.mxu0 0
    %1324 = vmatpush1.bf16.msra.mxu0 0
    %1325 = vmatprep.subr.bf16.mxu0 0
    %1326 = vmatpush1.bf16.msra.mxu0 0
    %1327 = vmatprep.subr.bf16.mxu0 0
    %1328 = vmatpush1.bf16.msra.mxu0 0
    %1329 = vmatprep.subr.bf16.mxu0 0
    %1330 = vmatpush1.bf16.msra.mxu0 0
    %1331 = vmatprep.subr.bf16.mxu0 0
    %1332 = vmatpush1.bf16.msra.mxu0 0
    %1333 = vmatprep.subr.bf16.mxu0 0
    %1334 = vmatpush1.bf16.msra.mxu0 0
    %1335 = vmatprep.mubr.bf16.mxu0 0
    %1336 = vmatmul.mubr.bf16.gmra.mrb[0].mxu0 %v1287
    %v1337 = vpop.f32.mrb[0].mxu0
    %v1338 = vadd.f32 0.0, %v1337
    %v1339 = vpop.f32.mrb[0].mxu0
    %v1340 = vpop.f32.mrb[0].mxu0
    %v1341 = vadd.f32 0.0, %v1340
    %v1342 = vpop.f32.mrb[0].mxu0
    %1343 = vmatprep.mubr.bf16.mxu0 0
    %1344 = vmatmul.mubr.bf16.gmra.mrb[0].mxu0 %v1288
    %v1345 = vpop.f32.mrb[0].mxu0
    %v1346 = vadd.f32 0.0, %v1345
    %v1347 = vpop.f32.mrb[0].mxu0
    %v1348 = vpop.f32.mrb[0].mxu0
    %v1349 = vadd.f32 0.0, %v1348
    %v1350 = vpop.f32.mrb[0].mxu0
    %1351 = vmatprep.mubr.bf16.mxu0 0
    %1352 = vmatmul.mubr.bf16.gmra.mrb[0].mxu0 %v1289
    %v1353 = vpop.f32.mrb[0].mxu0
    %v1354 = vadd.f32 0.0, %v1353
    %v1355 = vpop.f32.mrb[0].mxu0
    %v1356 = vpop.f32.mrb[0].mxu0
    %v1357 = vadd.f32 0.0, %v1356
    %v1358 = vpop.f32.mrb[0].mxu0
    %1359 = vmatprep.mubr.bf16.mxu0 0
    %1360 = vmatmul.mubr.bf16.gmra.mrb[0].mxu0 %v1290
    %v1361 = vpop.f32.mrb[0].mxu0
    %v1362 = vadd.f32 0.0, %v1361
    %v1363 = vpop.f32.mrb[0].mxu0
    %v1364 = vpop.f32.mrb[0].mxu0
    %v1365 = vadd.f32 0.0, %v1364
    %v1366 = vpop.f32.mrb[0].mxu0
    %1367 = vmatprep.mubr.bf16.mxu0 0
    %1368 = vmatmul.mubr.bf16.gmra.mrb[0].mxu0 %v1291
    %v1369 = vpop.f32.mrb[0].mxu0
    %v1370 = vadd.f32 0.0, %v1369
    %v1371 = vpop.f32.mrb[0].mxu0
    %v1372 = vpop.f32.mrb[0].mxu0
    %v1373 = vadd.f32 0.0, %v1372
    %v1374 = vpop.f32.mrb[0].mxu0
    %1375 = vmatprep.mubr.bf16.mxu0 0
    %1376 = vmatmul.mubr.bf16.gmra.mrb[0].mxu0 %v1292
    %v1377 = vpop.f32.mrb[0].mxu0
    %v1378 = vadd.f32 0.0, %v1377
    %v1379 = vpop.f32.mrb[0].mxu0
    %v1380 = vpop.f32.mrb[0].mxu0
    %v1381 = vadd.f32 0.0, %v1380
    %v1382 = vpop.f32.mrb[0].mxu0
    %1383 = vmatprep.mubr.bf16.mxu0 0
    %1384 = vmatmul.mubr.bf16.gmra.mrb[0].mxu0 %v1293
    %v1385 = vpop.f32.mrb[0].mxu0
    %v1386 = vadd.f32 0.0, %v1385
    %v1387 = vpop.f32.mrb[0].mxu0
    %v1388 = vpop.f32.mrb[0].mxu0
    %v1389 = vadd.f32 0.0, %v1388
    %v1390 = vpop.f32.mrb[0].mxu0
    %1391 = vmatprep.mubr.bf16.mxu0 0
    %1392 = vmatmul.mubr.bf16.gmra.mrb[0].mxu0 %v1294
    %v1393 = vpop.f32.mrb[0].mxu0
    %v1394 = vadd.f32 0.0, %v1393
    %v1395 = vpop.f32.mrb[0].mxu0
    %v1396 = vpop.f32.mrb[0].mxu0
    %v1397 = vadd.f32 0.0, %v1396
    %v1398 = vpop.f32.mrb[0].mxu0
    %1399 = vdwg.mxu0
    %v1400 = vld [vmem:[%s11] sm:$0xff]
    %v1401 = vld [vmem:[%s11 + $0x8] sm:$0xff]
    %v1402 = vld [vmem:[%s11 + $0x10] sm:$0xff]
    %v1403 = vld [vmem:[%s11 + $0x18] sm:$0xff]
    %v1404 = vld [vmem:[%s11 + $0x20] sm:$0xff]
    %v1405 = vld [vmem:[%s11 + $0x28] sm:$0xff]
    %v1406 = vld [vmem:[%s11 + $0x30] sm:$0xff]
    %v1407 = vld [vmem:[%s11 + $0x38] sm:$0xff]
    %1409 = vset.pattern.permute.xlu0 3
    %1410 = vperm.xlu0 %1409, %v1400
    %v1411 = vpop.permute.xlu0 %1410
    %1414 = vset.pattern.permute.xlu0 3
    %1415 = vperm.xlu0 %1414, %v1401
    %v1416 = vpop.permute.xlu0 %1415
    %1419 = vset.pattern.permute.xlu0 3
    %1420 = vperm.xlu0 %1419, %v1402
    %v1421 = vpop.permute.xlu0 %1420
    %1424 = vset.pattern.permute.xlu0 3
    %1425 = vperm.xlu0 %1424, %v1403
    %v1426 = vpop.permute.xlu0 %1425
    %1429 = vset.pattern.permute.xlu0 3
    %1430 = vperm.xlu0 %1429, %v1404
    %v1431 = vpop.permute.xlu0 %1430
    %1434 = vset.pattern.permute.xlu0 3
    %1435 = vperm.xlu0 %1434, %v1405
    %v1436 = vpop.permute.xlu0 %1435
    %1439 = vset.pattern.permute.xlu0 3
    %1440 = vperm.xlu0 %1439, %v1406
    %v1441 = vpop.permute.xlu0 %1440
    %1444 = vset.pattern.permute.xlu0 3
    %1445 = vperm.xlu0 %1444, %v1407
    %v1446 = vpop.permute.xlu0 %1445
    %v1448 = vadd.f32 %v1338, %v1411
    %v1449 = vadd.f32 %v1341, %v1416
    %v1450 = vadd.f32 %v1346, %v1421
    %v1451 = vadd.f32 %v1349, %v1426
    %v1452 = vadd.f32 %v1354, %v1431
    %v1453 = vadd.f32 %v1357, %v1436
    %v1454 = vadd.f32 %v1362, %v1441
    %v1455 = vadd.f32 %v1365, %v1446
    %v1456 = vmax.f32 %v1448, 0.0
    %v1457 = vmax.f32 %v1449, 0.0
    %v1458 = vmax.f32 %v1450, 0.0
    %v1459 = vmax.f32 %v1451, 0.0
    %v1460 = vmax.f32 %v1452, 0.0
    %v1461 = vmax.f32 %v1453, 0.0
    %v1462 = vmax.f32 %v1454, 0.0
    %v1463 = vmax.f32 %v1455, 0.0
    %v1464 = vadd.f32 %v1456, %v1370
    %v1465 = vadd.f32 %v1457, %v1373
    %v1466 = vadd.f32 %v1458, %v1378
    %v1467 = vadd.f32 %v1459, %v1381
    %v1468 = vadd.f32 %v1460, %v1386
    %v1469 = vadd.f32 %v1461, %v1389
    %v1470 = vadd.f32 %v1462, %v1394
    %v1471 = vadd.f32 %v1463, %v1397
    %v1472 = vld [vmem:[%s5] sm:$0xf]
    %v1473 = vld [vmem:[%s5 + $0x4] sm:$0xf]
    %v1474 = vld [vmem:[%s5 + $0x8] sm:$0xf]
    %v1475 = vld [vmem:[%s5 + $0xc] sm:$0xf]
    %v1476 = vld [vmem:[%s5 + $0x10] sm:$0xf]
    %v1477 = vld [vmem:[%s5 + $0x14] sm:$0xf]
    %v1478 = vld [vmem:[%s5 + $0x18] sm:$0xf]
    %v1479 = vld [vmem:[%s5 + $0x1c] sm:$0xf]
    %v1480 = vpack.c.bf16 %v1465, %v1464
    %v1481 = vpack.c.bf16 %v1467, %v1466
    %v1482 = vpack.c.bf16 %v1469, %v1468
    %v1483 = vpack.c.bf16 %v1471, %v1470
    %1484 = vset.pattern.permute.xlu0 4
    %1485 = vperm.xlu0 %1484, %v1400
    %v1486 = vpop.permute.xlu0 %1485
    %1488 = vset.pattern.permute.xlu0 4
    %1489 = vperm.xlu0 %1488, %v1401
    %v1490 = vpop.permute.xlu0 %1489
    %1492 = vset.pattern.permute.xlu0 4
    %1493 = vperm.xlu0 %1492, %v1402
    %v1494 = vpop.permute.xlu0 %1493
    %1496 = vset.pattern.permute.xlu0 4
    %1497 = vperm.xlu0 %1496, %v1403
    %v1498 = vpop.permute.xlu0 %1497
    %1500 = vset.pattern.permute.xlu0 4
    %1501 = vperm.xlu0 %1500, %v1404
    %v1502 = vpop.permute.xlu0 %1501
    %1504 = vset.pattern.permute.xlu0 4
    %1505 = vperm.xlu0 %1504, %v1405
    %v1506 = vpop.permute.xlu0 %1505
    %1508 = vset.pattern.permute.xlu0 4
    %1509 = vperm.xlu0 %1508, %v1406
    %v1510 = vpop.permute.xlu0 %1509
    %1512 = vset.pattern.permute.xlu0 4
    %1513 = vperm.xlu0 %1512, %v1407
    %v1514 = vpop.permute.xlu0 %1513
    %v1524 = vunpack.c.l.b16 %v1472
    %v1525 = vunpack.c.l.b16 %v1473
    %v1526 = vunpack.c.l.b16 %v1474
    %v1527 = vunpack.c.l.b16 %v1475
    %v1528 = vunpack.c.l.b16 %v1476
    %v1529 = vunpack.c.l.b16 %v1477
    %v1530 = vunpack.c.l.b16 %v1478
    %v1531 = vunpack.c.l.b16 %v1479
    %v1532 = vpack.c.b16 %v1525, %v1524
    %v1533 = vpack.c.b16 %v1527, %v1526
    %v1534 = vpack.c.b16 %v1529, %v1528
    %v1535 = vpack.c.b16 %v1531, %v1530
    %vm1536 = vcmask 523264
    %v1538 = vsel %vm1536, %v1532, 0
    %v1541 = vsel %vm1536, %v1533, 0
    %v1544 = vsel %vm1536, %v1534, 0
    %v1547 = vsel %vm1536, %v1535, 0
    %1549 = vmatprep.subr.bf16.mxu0 0
    %1550 = vmatpush1.bf16.msra.mxu0 %v1480
    %1551 = vmatprep.subr.bf16.mxu0 0
    %1552 = vmatpush1.bf16.msra.mxu0 %v1481
    %1553 = vmatprep.subr.bf16.mxu0 0
    %1554 = vmatpush1.bf16.msra.mxu0 %v1482
    %1555 = vmatprep.subr.bf16.mxu0 0
    %1556 = vmatpush1.bf16.msra.mxu0 %v1483
    %1557 = vmatprep.subr.bf16.mxu0 0
    %1558 = vmatpush1.bf16.msra.mxu0 0
    %1559 = vmatprep.subr.bf16.mxu0 0
    %1560 = vmatpush1.bf16.msra.mxu0 0
    %1561 = vmatprep.subr.bf16.mxu0 0
    %1562 = vmatpush1.bf16.msra.mxu0 0
    %1563 = vmatprep.subr.bf16.mxu0 0
    %1564 = vmatpush1.bf16.msra.mxu0 0
    %1565 = vmatprep.subr.bf16.mxu0 0
    %1566 = vmatpush1.bf16.msra.mxu0 0
    %1567 = vmatprep.subr.bf16.mxu0 0
    %1568 = vmatpush1.bf16.msra.mxu0 0
    %1569 = vmatprep.subr.bf16.mxu0 0
    %1570 = vmatpush1.bf16.msra.mxu0 0
    %1571 = vmatprep.subr.bf16.mxu0 0
    %1572 = vmatpush1.bf16.msra.mxu0 0
    %1573 = vmatprep.subr.bf16.mxu0 0
    %1574 = vmatpush1.bf16.msra.mxu0 0
    %1575 = vmatprep.subr.bf16.mxu0 0
    %1576 = vmatpush1.bf16.msra.mxu0 0
    %1577 = vmatprep.subr.bf16.mxu0 0
    %1578 = vmatpush1.bf16.msra.mxu0 0
    %1579 = vmatprep.subr.bf16.mxu0 0
    %1580 = vmatpush1.bf16.msra.mxu0 0
    %1581 = vmatprep.mubr.bf16.mxu0 0
    %1582 = vmatmul.mubr.bf16.gmra.mrb[0].mxu0 %v1538
    %v1583 = vpop.f32.mrb[0].mxu0
    %v1584 = vadd.f32 %v1486, %v1583
    %v1585 = vpop.f32.mrb[0].mxu0
    %v1586 = vpop.f32.mrb[0].mxu0
    %v1587 = vadd.f32 %v1490, %v1586
    %v1588 = vpop.f32.mrb[0].mxu0
    %1589 = vmatprep.mubr.bf16.mxu0 0
    %1590 = vmatmul.mubr.bf16.gmra.mrb[0].mxu0 %v1541
    %v1591 = vpop.f32.mrb[0].mxu0
    %v1592 = vadd.f32 %v1494, %v1591
    %v1593 = vpop.f32.mrb[0].mxu0
    %v1594 = vpop.f32.mrb[0].mxu0
    %v1595 = vadd.f32 %v1498, %v1594
    %v1596 = vpop.f32.mrb[0].mxu0
    %1597 = vmatprep.mubr.bf16.mxu0 0
    %1598 = vmatmul.mubr.bf16.gmra.mrb[0].mxu0 %v1544
    %v1599 = vpop.f32.mrb[0].mxu0
    %v1600 = vadd.f32 %v1502, %v1599
    %v1601 = vpop.f32.mrb[0].mxu0
    %v1602 = vpop.f32.mrb[0].mxu0
    %v1603 = vadd.f32 %v1506, %v1602
    %v1604 = vpop.f32.mrb[0].mxu0
    %1605 = vmatprep.mubr.bf16.mxu0 0
    %1606 = vmatmul.mubr.bf16.gmra.mrb[0].mxu0 %v1547
    %v1607 = vpop.f32.mrb[0].mxu0
    %v1608 = vadd.f32 %v1510, %v1607
    %v1609 = vpop.f32.mrb[0].mxu0
    %v1610 = vpop.f32.mrb[0].mxu0
    %v1611 = vadd.f32 %v1514, %v1610
    %v1612 = vpop.f32.mrb[0].mxu0
    %1613 = vdwg.mxu0
    %v1614 = vmax.f32 %v1584, 0.0
    %v1615 = vmax.f32 %v1587, 0.0
    %v1616 = vmax.f32 %v1592, 0.0
    %v1617 = vmax.f32 %v1595, 0.0
    %v1618 = vmax.f32 %v1600, 0.0
    %v1619 = vmax.f32 %v1603, 0.0
    %v1620 = vmax.f32 %v1608, 0.0
    %v1621 = vmax.f32 %v1611, 0.0
    %v1622 = vadd.f32 %v1614, %v1464
    %v1623 = vadd.f32 %v1615, %v1465
    %v1624 = vadd.f32 %v1616, %v1466
    %v1625 = vadd.f32 %v1617, %v1467
    %v1626 = vadd.f32 %v1618, %v1468
    %v1627 = vadd.f32 %v1619, %v1469
    %v1628 = vadd.f32 %v1620, %v1470
    %v1629 = vadd.f32 %v1621, %v1471
    %v1630 = vld [vmem:[%s6] sm:$0xf]
    %v1631 = vld [vmem:[%s6 + $0x4] sm:$0xf]
    %v1632 = vld [vmem:[%s6 + $0x8] sm:$0xf]
    %v1633 = vld [vmem:[%s6 + $0xc] sm:$0xf]
    %v1634 = vld [vmem:[%s6 + $0x10] sm:$0xf]
    %v1635 = vld [vmem:[%s6 + $0x14] sm:$0xf]
    %v1636 = vld [vmem:[%s6 + $0x18] sm:$0xf]
    %v1637 = vld [vmem:[%s6 + $0x1c] sm:$0xf]
    %v1638 = vpack.c.bf16 %v1623, %v1622
    %v1639 = vpack.c.bf16 %v1625, %v1624
    %v1640 = vpack.c.bf16 %v1627, %v1626
    %v1641 = vpack.c.bf16 %v1629, %v1628
    %1642 = vset.pattern.permute.xlu0 5
    %1643 = vperm.xlu0 %1642, %v1400
    %v1644 = vpop.permute.xlu0 %1643
    %1646 = vset.pattern.permute.xlu0 5
    %1647 = vperm.xlu0 %1646, %v1401
    %v1648 = vpop.permute.xlu0 %1647
    %1650 = vset.pattern.permute.xlu0 5
    %1651 = vperm.xlu0 %1650, %v1402
    %v1652 = vpop.permute.xlu0 %1651
    %1654 = vset.pattern.permute.xlu0 5
    %1655 = vperm.xlu0 %1654, %v1403
    %v1656 = vpop.permute.xlu0 %1655
    %1658 = vset.pattern.permute.xlu0 5
    %1659 = vperm.xlu0 %1658, %v1404
    %v1660 = vpop.permute.xlu0 %1659
    %1662 = vset.pattern.permute.xlu0 5
    %1663 = vperm.xlu0 %1662, %v1405
    %v1664 = vpop.permute.xlu0 %1663
    %1666 = vset.pattern.permute.xlu0 5
    %1667 = vperm.xlu0 %1666, %v1406
    %v1668 = vpop.permute.xlu0 %1667
    %1670 = vset.pattern.permute.xlu0 5
    %1671 = vperm.xlu0 %1670, %v1407
    %v1672 = vpop.permute.xlu0 %1671
    %v1682 = vunpack.c.l.b16 %v1630
    %v1683 = vunpack.c.l.b16 %v1631
    %v1684 = vunpack.c.l.b16 %v1632
    %v1685 = vunpack.c.l.b16 %v1633
    %v1686 = vunpack.c.l.b16 %v1634
    %v1687 = vunpack.c.l.b16 %v1635
    %v1688 = vunpack.c.l.b16 %v1636
    %v1689 = vunpack.c.l.b16 %v1637
    %v1690 = vpack.c.b16 %v1683, %v1682
    %v1691 = vpack.c.b16 %v1685, %v1684
    %v1692 = vpack.c.b16 %v1687, %v1686
    %v1693 = vpack.c.b16 %v1689, %v1688
    %v1695 = vsel %vm1536, %v1690, 0
    %v1698 = vsel %vm1536, %v1691, 0
    %v1701 = vsel %vm1536, %v1692, 0
    %v1704 = vsel %vm1536, %v1693, 0
    %1706 = vmatprep.subr.bf16.mxu0 0
    %1707 = vmatpush1.bf16.msra.mxu0 %v1638
    %1708 = vmatprep.subr.bf16.mxu0 0
    %1709 = vmatpush1.bf16.msra.mxu0 %v1639
    %1710 = vmatprep.subr.bf16.mxu0 0
    %1711 = vmatpush1.bf16.msra.mxu0 %v1640
    %1712 = vmatprep.subr.bf16.mxu0 0
    %1713 = vmatpush1.bf16.msra.mxu0 %v1641
    %1714 = vmatprep.subr.bf16.mxu0 0
    %1715 = vmatpush1.bf16.msra.mxu0 0
    %1716 = vmatprep.subr.bf16.mxu0 0
    %1717 = vmatpush1.bf16.msra.mxu0 0
    %1718 = vmatprep.subr.bf16.mxu0 0
    %1719 = vmatpush1.bf16.msra.mxu0 0
    %1720 = vmatprep.subr.bf16.mxu0 0
    %1721 = vmatpush1.bf16.msra.mxu0 0
    %1722 = vmatprep.subr.bf16.mxu0 0
    %1723 = vmatpush1.bf16.msra.mxu0 0
    %1724 = vmatprep.subr.bf16.mxu0 0
    %1725 = vmatpush1.bf16.msra.mxu0 0
    %1726 = vmatprep.subr.bf16.mxu0 0
    %1727 = vmatpush1.bf16.msra.mxu0 0
    %1728 = vmatprep.subr.bf16.mxu0 0
    %1729 = vmatpush1.bf16.msra.mxu0 0
    %1730 = vmatprep.subr.bf16.mxu0 0
    %1731 = vmatpush1.bf16.msra.mxu0 0
    %1732 = vmatprep.subr.bf16.mxu0 0
    %1733 = vmatpush1.bf16.msra.mxu0 0
    %1734 = vmatprep.subr.bf16.mxu0 0
    %1735 = vmatpush1.bf16.msra.mxu0 0
    %1736 = vmatprep.subr.bf16.mxu0 0
    %1737 = vmatpush1.bf16.msra.mxu0 0
    %1738 = vmatprep.mubr.bf16.mxu0 0
    %1739 = vmatmul.mubr.bf16.gmra.mrb[0].mxu0 %v1695
    %v1740 = vpop.f32.mrb[0].mxu0
    %v1741 = vadd.f32 %v1644, %v1740
    %v1742 = vpop.f32.mrb[0].mxu0
    %v1743 = vpop.f32.mrb[0].mxu0
    %v1744 = vadd.f32 %v1648, %v1743
    %v1745 = vpop.f32.mrb[0].mxu0
    %1746 = vmatprep.mubr.bf16.mxu0 0
    %1747 = vmatmul.mubr.bf16.gmra.mrb[0].mxu0 %v1698
    %v1748 = vpop.f32.mrb[0].mxu0
    %v1749 = vadd.f32 %v1652, %v1748
    %v1750 = vpop.f32.mrb[0].mxu0
    %v1751 = vpop.f32.mrb[0].mxu0
    %v1752 = vadd.f32 %v1656, %v1751
    %v1753 = vpop.f32.mrb[0].mxu0
    %1754 = vmatprep.mubr.bf16.mxu0 0
    %1755 = vmatmul.mubr.bf16.gmra.mrb[0].mxu0 %v1701
    %v1756 = vpop.f32.mrb[0].mxu0
    %v1757 = vadd.f32 %v1660, %v1756
    %v1758 = vpop.f32.mrb[0].mxu0
    %v1759 = vpop.f32.mrb[0].mxu0
    %v1760 = vadd.f32 %v1664, %v1759
    %v1761 = vpop.f32.mrb[0].mxu0
    %1762 = vmatprep.mubr.bf16.mxu0 0
    %1763 = vmatmul.mubr.bf16.gmra.mrb[0].mxu0 %v1704
    %v1764 = vpop.f32.mrb[0].mxu0
    %v1765 = vadd.f32 %v1668, %v1764
    %v1766 = vpop.f32.mrb[0].mxu0
    %v1767 = vpop.f32.mrb[0].mxu0
    %v1768 = vadd.f32 %v1672, %v1767
    %v1769 = vpop.f32.mrb[0].mxu0
    %1770 = vdwg.mxu0
    %v1771 = vmax.f32 %v1741, 0.0
    %v1772 = vmax.f32 %v1744, 0.0
    %v1773 = vmax.f32 %v1749, 0.0
    %v1774 = vmax.f32 %v1752, 0.0
    %v1775 = vmax.f32 %v1757, 0.0
    %v1776 = vmax.f32 %v1760, 0.0
    %v1777 = vmax.f32 %v1765, 0.0
    %v1778 = vmax.f32 %v1768, 0.0
    %v1779 = vadd.f32 %v1771, %v1622
    %v1780 = vadd.f32 %v1772, %v1623
    %v1781 = vadd.f32 %v1773, %v1624
    %v1782 = vadd.f32 %v1774, %v1625
    %v1783 = vadd.f32 %v1775, %v1626
    %v1784 = vadd.f32 %v1776, %v1627
    %v1785 = vadd.f32 %v1777, %v1628
    %v1786 = vadd.f32 %v1778, %v1629
    %v1787 = vld [vmem:[%s7] sm:$0xf]
    %v1788 = vld [vmem:[%s7 + $0x4] sm:$0xf]
    %v1789 = vld [vmem:[%s7 + $0x8] sm:$0xf]
    %v1790 = vld [vmem:[%s7 + $0xc] sm:$0xf]
    %v1791 = vld [vmem:[%s7 + $0x10] sm:$0xf]
    %v1792 = vld [vmem:[%s7 + $0x14] sm:$0xf]
    %v1793 = vld [vmem:[%s7 + $0x18] sm:$0xf]
    %v1794 = vld [vmem:[%s7 + $0x1c] sm:$0xf]
    %v1795 = vpack.c.bf16 %v1780, %v1779
    %v1796 = vpack.c.bf16 %v1782, %v1781
    %v1797 = vpack.c.bf16 %v1784, %v1783
    %v1798 = vpack.c.bf16 %v1786, %v1785
    %1799 = vset.pattern.permute.xlu0 6
    %1800 = vperm.xlu0 %1799, %v1400
    %v1801 = vpop.permute.xlu0 %1800
    %1803 = vset.pattern.permute.xlu0 6
    %1804 = vperm.xlu0 %1803, %v1401
    %v1805 = vpop.permute.xlu0 %1804
    %1807 = vset.pattern.permute.xlu0 6
    %1808 = vperm.xlu0 %1807, %v1402
    %v1809 = vpop.permute.xlu0 %1808
    %1811 = vset.pattern.permute.xlu0 6
    %1812 = vperm.xlu0 %1811, %v1403
    %v1813 = vpop.permute.xlu0 %1812
    %1815 = vset.pattern.permute.xlu0 6
    %1816 = vperm.xlu0 %1815, %v1404
    %v1817 = vpop.permute.xlu0 %1816
    %1819 = vset.pattern.permute.xlu0 6
    %1820 = vperm.xlu0 %1819, %v1405
    %v1821 = vpop.permute.xlu0 %1820
    %1823 = vset.pattern.permute.xlu0 6
    %1824 = vperm.xlu0 %1823, %v1406
    %v1825 = vpop.permute.xlu0 %1824
    %1827 = vset.pattern.permute.xlu0 6
    %1828 = vperm.xlu0 %1827, %v1407
    %v1829 = vpop.permute.xlu0 %1828
    %v1839 = vunpack.c.l.b16 %v1787
    %v1840 = vunpack.c.l.b16 %v1788
    %v1841 = vunpack.c.l.b16 %v1789
    %v1842 = vunpack.c.l.b16 %v1790
    %v1843 = vunpack.c.l.b16 %v1791
    %v1844 = vunpack.c.l.b16 %v1792
    %v1845 = vunpack.c.l.b16 %v1793
    %v1846 = vunpack.c.l.b16 %v1794
    %v1847 = vpack.c.b16 %v1840, %v1839
    %v1848 = vpack.c.b16 %v1842, %v1841
    %v1849 = vpack.c.b16 %v1844, %v1843
    %v1850 = vpack.c.b16 %v1846, %v1845
    %v1852 = vsel %vm1536, %v1847, 0
    %v1855 = vsel %vm1536, %v1848, 0
    %v1858 = vsel %vm1536, %v1849, 0
    %v1861 = vsel %vm1536, %v1850, 0
    %1863 = vmatprep.subr.bf16.mxu0 0
    %1864 = vmatpush1.bf16.msra.mxu0 %v1795
    %1865 = vmatprep.subr.bf16.mxu0 0
    %1866 = vmatpush1.bf16.msra.mxu0 %v1796
    %1867 = vmatprep.subr.bf16.mxu0 0
    %1868 = vmatpush1.bf16.msra.mxu0 %v1797
    %1869 = vmatprep.subr.bf16.mxu0 0
    %1870 = vmatpush1.bf16.msra.mxu0 %v1798
    %1871 = vmatprep.subr.bf16.mxu0 0
    %1872 = vmatpush1.bf16.msra.mxu0 0
    %1873 = vmatprep.subr.bf16.mxu0 0
    %1874 = vmatpush1.bf16.msra.mxu0 0
    %1875 = vmatprep.subr.bf16.mxu0 0
    %1876 = vmatpush1.bf16.msra.mxu0 0
    %1877 = vmatprep.subr.bf16.mxu0 0
    %1878 = vmatpush1.bf16.msra.mxu0 0
    %1879 = vmatprep.subr.bf16.mxu0 0
    %1880 = vmatpush1.bf16.msra.mxu0 0
    %1881 = vmatprep.subr.bf16.mxu0 0
    %1882 = vmatpush1.bf16.msra.mxu0 0
    %1883 = vmatprep.subr.bf16.mxu0 0
    %1884 = vmatpush1.bf16.msra.mxu0 0
    %1885 = vmatprep.subr.bf16.mxu0 0
    %1886 = vmatpush1.bf16.msra.mxu0 0
    %1887 = vmatprep.subr.bf16.mxu0 0
    %1888 = vmatpush1.bf16.msra.mxu0 0
    %1889 = vmatprep.subr.bf16.mxu0 0
    %1890 = vmatpush1.bf16.msra.mxu0 0
    %1891 = vmatprep.subr.bf16.mxu0 0
    %1892 = vmatpush1.bf16.msra.mxu0 0
    %1893 = vmatprep.subr.bf16.mxu0 0
    %1894 = vmatpush1.bf16.msra.mxu0 0
    %1895 = vmatprep.mubr.bf16.mxu0 0
    %1896 = vmatmul.mubr.bf16.gmra.mrb[0].mxu0 %v1852
    %v1897 = vpop.f32.mrb[0].mxu0
    %v1898 = vadd.f32 %v1801, %v1897
    %v1899 = vpop.f32.mrb[0].mxu0
    %v1900 = vpop.f32.mrb[0].mxu0
    %v1901 = vadd.f32 %v1805, %v1900
    %v1902 = vpop.f32.mrb[0].mxu0
    %1903 = vmatprep.mubr.bf16.mxu0 0
    %1904 = vmatmul.mubr.bf16.gmra.mrb[0].mxu0 %v1855
    %v1905 = vpop.f32.mrb[0].mxu0
    %v1906 = vadd.f32 %v1809, %v1905
    %v1907 = vpop.f32.mrb[0].mxu0
    %v1908 = vpop.f32.mrb[0].mxu0
    %v1909 = vadd.f32 %v1813, %v1908
    %v1910 = vpop.f32.mrb[0].mxu0
    %1911 = vmatprep.mubr.bf16.mxu0 0
    %1912 = vmatmul.mubr.bf16.gmra.mrb[0].mxu0 %v1858
    %v1913 = vpop.f32.mrb[0].mxu0
    %v1914 = vadd.f32 %v1817, %v1913
    %v1915 = vpop.f32.mrb[0].mxu0
    %v1916 = vpop.f32.mrb[0].mxu0
    %v1917 = vadd.f32 %v1821, %v1916
    %v1918 = vpop.f32.mrb[0].mxu0
    %1919 = vmatprep.mubr.bf16.mxu0 0
    %1920 = vmatmul.mubr.bf16.gmra.mrb[0].mxu0 %v1861
    %v1921 = vpop.f32.mrb[0].mxu0
    %v1922 = vadd.f32 %v1825, %v1921
    %v1923 = vpop.f32.mrb[0].mxu0
    %v1924 = vpop.f32.mrb[0].mxu0
    %v1925 = vadd.f32 %v1829, %v1924
    %v1926 = vpop.f32.mrb[0].mxu0
    %1927 = vdwg.mxu0
    %v1928 = vmax.f32 %v1898, 0.0
    %v1929 = vmax.f32 %v1901, 0.0
    %v1930 = vmax.f32 %v1906, 0.0
    %v1931 = vmax.f32 %v1909, 0.0
    %v1932 = vmax.f32 %v1914, 0.0
    %v1933 = vmax.f32 %v1917, 0.0
    %v1934 = vmax.f32 %v1922, 0.0
    %v1935 = vmax.f32 %v1925, 0.0
    %v1936 = vadd.f32 %v1928, %v1779
    %v1937 = vadd.f32 %v1929, %v1780
    %v1938 = vadd.f32 %v1930, %v1781
    %v1939 = vadd.f32 %v1931, %v1782
    %v1940 = vadd.f32 %v1932, %v1783
    %v1941 = vadd.f32 %v1933, %v1784
    %v1942 = vadd.f32 %v1934, %v1785
    %v1943 = vadd.f32 %v1935, %v1786
    %v1944 = vld [vmem:[%s8] sm:$0xf]
    %v1945 = vld [vmem:[%s8 + $0x4] sm:$0xf]
    %v1946 = vld [vmem:[%s8 + $0x8] sm:$0xf]
    %v1947 = vld [vmem:[%s8 + $0xc] sm:$0xf]
    %v1948 = vld [vmem:[%s8 + $0x10] sm:$0xf]
    %v1949 = vld [vmem:[%s8 + $0x14] sm:$0xf]
    %v1950 = vld [vmem:[%s8 + $0x18] sm:$0xf]
    %v1951 = vld [vmem:[%s8 + $0x1c] sm:$0xf]
    %v1952 = vpack.c.bf16 %v1937, %v1936
    %v1953 = vpack.c.bf16 %v1939, %v1938
    %v1954 = vpack.c.bf16 %v1941, %v1940
    %v1955 = vpack.c.bf16 %v1943, %v1942
    %v1964 = vunpack.c.l.b16 %v1944
    %v1965 = vunpack.c.l.b16 %v1945
    %v1966 = vunpack.c.l.b16 %v1946
    %v1967 = vunpack.c.l.b16 %v1947
    %v1968 = vunpack.c.l.b16 %v1948
    %v1969 = vunpack.c.l.b16 %v1949
    %v1970 = vunpack.c.l.b16 %v1950
    %v1971 = vunpack.c.l.b16 %v1951
    %v1972 = vpack.c.b16 %v1965, %v1964
    %v1973 = vpack.c.b16 %v1967, %v1966
    %v1974 = vpack.c.b16 %v1969, %v1968
    %v1975 = vpack.c.b16 %v1971, %v1970
    %v1977 = vsel %vm1536, %v1972, 0
    %v1980 = vsel %vm1536, %v1973, 0
    %v1983 = vsel %vm1536, %v1974, 0
    %v1986 = vsel %vm1536, %v1975, 0
    %1988 = vmatprep.subr.bf16.mxu0 0
    %1989 = vmatpush1.bf16.msra.mxu0 %v1952
    %1990 = vmatprep.subr.bf16.mxu0 0
    %1991 = vmatpush1.bf16.msra.mxu0 %v1953
    %1992 = vmatprep.subr.bf16.mxu0 0
    %1993 = vmatpush1.bf16.msra.mxu0 %v1954
    %1994 = vmatprep.subr.bf16.mxu0 0
    %1995 = vmatpush1.bf16.msra.mxu0 %v1955
    %1996 = vmatprep.subr.bf16.mxu0 0
    %1997 = vmatpush1.bf16.msra.mxu0 0
    %1998 = vmatprep.subr.bf16.mxu0 0
    %1999 = vmatpush1.bf16.msra.mxu0 0
    %2000 = vmatprep.subr.bf16.mxu0 0
    %2001 = vmatpush1.bf16.msra.mxu0 0
    %2002 = vmatprep.subr.bf16.mxu0 0
    %2003 = vmatpush1.bf16.msra.mxu0 0
    %2004 = vmatprep.subr.bf16.mxu0 0
    %2005 = vmatpush1.bf16.msra.mxu0 0
    %2006 = vmatprep.subr.bf16.mxu0 0
    %2007 = vmatpush1.bf16.msra.mxu0 0
    %2008 = vmatprep.subr.bf16.mxu0 0
    %2009 = vmatpush1.bf16.msra.mxu0 0
    %2010 = vmatprep.subr.bf16.mxu0 0
    %2011 = vmatpush1.bf16.msra.mxu0 0
    %2012 = vmatprep.subr.bf16.mxu0 0
    %2013 = vmatpush1.bf16.msra.mxu0 0
    %2014 = vmatprep.subr.bf16.mxu0 0
    %2015 = vmatpush1.bf16.msra.mxu0 0
    %2016 = vmatprep.subr.bf16.mxu0 0
    %2017 = vmatpush1.bf16.msra.mxu0 0
    %2018 = vmatprep.subr.bf16.mxu0 0
    %2019 = vmatpush1.bf16.msra.mxu0 0
    %2020 = vmatprep.mubr.bf16.mxu0 0
    %2021 = vmatmul.mubr.bf16.gmra.mrb[0].mxu0 %v1977
    %v2022 = vpop.f32.mrb[0].mxu0
    %v2023 = vadd.f32 0.0, %v2022
    %v2024 = vpop.f32.mrb[0].mxu0
    %v2025 = vpop.f32.mrb[0].mxu0
    %v2026 = vadd.f32 0.0, %v2025
    %v2027 = vpop.f32.mrb[0].mxu0
    %2028 = vmatprep.mubr.bf16.mxu0 0
    %2029 = vmatmul.mubr.bf16.gmra.mrb[0].mxu0 %v1980
    %v2030 = vpop.f32.mrb[0].mxu0
    %v2031 = vadd.f32 0.0, %v2030
    %v2032 = vpop.f32.mrb[0].mxu0
    %v2033 = vpop.f32.mrb[0].mxu0
    %v2034 = vadd.f32 0.0, %v2033
    %v2035 = vpop.f32.mrb[0].mxu0
    %2036 = vmatprep.mubr.bf16.mxu0 0
    %2037 = vmatmul.mubr.bf16.gmra.mrb[0].mxu0 %v1983
    %v2038 = vpop.f32.mrb[0].mxu0
    %v2039 = vadd.f32 0.0, %v2038
    %v2040 = vpop.f32.mrb[0].mxu0
    %v2041 = vpop.f32.mrb[0].mxu0
    %v2042 = vadd.f32 0.0, %v2041
    %v2043 = vpop.f32.mrb[0].mxu0
    %2044 = vmatprep.mubr.bf16.mxu0 0
    %2045 = vmatmul.mubr.bf16.gmra.mrb[0].mxu0 %v1986
    %v2046 = vpop.f32.mrb[0].mxu0
    %v2047 = vadd.f32 0.0, %v2046
    %v2048 = vpop.f32.mrb[0].mxu0
    %v2049 = vpop.f32.mrb[0].mxu0
    %v2050 = vadd.f32 0.0, %v2049
    %v2051 = vpop.f32.mrb[0].mxu0
    %2052 = vdwg.mxu0
    %v2053 = vld [vmem:[%s11] sm:$0xff]
    %v2054 = vld [vmem:[%s11 + $0x8] sm:$0xff]
    %v2055 = vld [vmem:[%s11 + $0x10] sm:$0xff]
    %v2056 = vld [vmem:[%s11 + $0x18] sm:$0xff]
    %2058 = vset.pattern.permute.xlu0 7
    %2059 = vperm.xlu0 %2058, %v2053
    %v2060 = vpop.permute.xlu0 %2059
    %2063 = vset.pattern.permute.xlu0 7
    %2064 = vperm.xlu0 %2063, %v2054
    %v2065 = vpop.permute.xlu0 %2064
    %2068 = vset.pattern.permute.xlu0 7
    %2069 = vperm.xlu0 %2068, %v2055
    %v2070 = vpop.permute.xlu0 %2069
    %2073 = vset.pattern.permute.xlu0 7
    %2074 = vperm.xlu0 %2073, %v2056
    %v2075 = vpop.permute.xlu0 %2074
    %v2077 = vadd.f32 %v2023, %v2060
    %v2078 = vadd.f32 %v2026, %v2065
    %v2079 = vadd.f32 %v2031, %v2070
    %v2080 = vadd.f32 %v2034, %v2075
    %v2081 = vmax.f32 %v2077, 0.0
    %v2082 = vmax.f32 %v2078, 0.0
    %v2083 = vmax.f32 %v2079, 0.0
    %v2084 = vmax.f32 %v2080, 0.0
    %v2085 = vadd.f32 %v2081, %v2039
    %v2086 = vadd.f32 %v2082, %v2042
    %v2087 = vadd.f32 %v2083, %v2047
    %v2088 = vadd.f32 %v2084, %v2050
    %v2089 = vld [vmem:[%s9] sm:$0xf]
    %v2090 = vld [vmem:[%s9 + $0x4] sm:$0xf]
    %v2091 = vpack.c.bf16 %v2086, %v2085
    %v2092 = vpack.c.bf16 %v2088, %v2087
    %v2093 = vld [vmem:[%s11] sm:$0xff]
    %v2094 = vld [vmem:[%s11 + $0x8] sm:$0xff]
    %2096 = vset.pattern.permute.xlu0 8
    %2097 = vperm.xlu0 %2096, %v2093
    %v2098 = vpop.permute.xlu0 %2097
    %2101 = vset.pattern.permute.xlu0 8
    %2102 = vperm.xlu0 %2101, %v2094
    %v2103 = vpop.permute.xlu0 %2102
    %v2107 = vunpack.c.l.b16 %v2089
    %v2108 = vunpack.c.l.b16 %v2090
    %v2109 = vpack.c.b16 %v2108, %v2107
    %vm2110 = vcmask 261120
    %v2112 = vsel %vm2110, %v2109, 0
    %2114 = vmatprep.subr.bf16.mxu0 0
    %2115 = vmatpush1.bf16.msra.mxu0 %v2091
    %2116 = vmatprep.subr.bf16.mxu0 0
    %2117 = vmatpush1.bf16.msra.mxu0 %v2092
    %2118 = vmatprep.subr.bf16.mxu0 0
    %2119 = vmatpush1.bf16.msra.mxu0 0
    %2120 = vmatprep.subr.bf16.mxu0 0
    %2121 = vmatpush1.bf16.msra.mxu0 0
    %2122 = vmatprep.subr.bf16.mxu0 0
    %2123 = vmatpush1.bf16.msra.mxu0 0
    %2124 = vmatprep.subr.bf16.mxu0 0
    %2125 = vmatpush1.bf16.msra.mxu0 0
    %2126 = vmatprep.subr.bf16.mxu0 0
    %2127 = vmatpush1.bf16.msra.mxu0 0
    %2128 = vmatprep.subr.bf16.mxu0 0
    %2129 = vmatpush1.bf16.msra.mxu0 0
    %2130 = vmatprep.subr.bf16.mxu0 0
    %2131 = vmatpush1.bf16.msra.mxu0 0
    %2132 = vmatprep.subr.bf16.mxu0 0
    %2133 = vmatpush1.bf16.msra.mxu0 0
    %2134 = vmatprep.subr.bf16.mxu0 0
    %2135 = vmatpush1.bf16.msra.mxu0 0
    %2136 = vmatprep.subr.bf16.mxu0 0
    %2137 = vmatpush1.bf16.msra.mxu0 0
    %2138 = vmatprep.subr.bf16.mxu0 0
    %2139 = vmatpush1.bf16.msra.mxu0 0
    %2140 = vmatprep.subr.bf16.mxu0 0
    %2141 = vmatpush1.bf16.msra.mxu0 0
    %2142 = vmatprep.subr.bf16.mxu0 0
    %2143 = vmatpush1.bf16.msra.mxu0 0
    %2144 = vmatprep.subr.bf16.mxu0 0
    %2145 = vmatpush1.bf16.msra.mxu0 0
    %2146 = vmatprep.mubr.bf16.mxu0 0
    %2147 = vmatmul.mubr.bf16.gmra.mrb[0].mxu0 %v2112
    %v2148 = vpop.f32.mrb[0].mxu0
    %v2149 = vadd.f32 %v2098, %v2148
    %v2150 = vpop.f32.mrb[0].mxu0
    %v2151 = vpop.f32.mrb[0].mxu0
    %v2152 = vadd.f32 %v2103, %v2151
    %v2153 = vpop.f32.mrb[0].mxu0
    %2154 = vdwg.mxu0
    %v2155 = vmax.f32 %v2149, 0.0
    %v2156 = vmax.f32 %v2152, 0.0
    %v2157 = vld [vmem:[%s10] sm:$0xf]
    %v2158 = vpack.c.bf16 %v2156, %v2155
    %vm2159 = vcmask 392192
    %v2161 = vsel %vm2159, %v2157, 0
    %2163 = vmatprep.subr.bf16.mxu0 0
    %2164 = vmatpush1.bf16.msra.mxu0 %v2158
    %2165 = vmatprep.subr.bf16.mxu0 0
    %2166 = vmatpush1.bf16.msra.mxu0 %v2091
    %2167 = vmatprep.subr.bf16.mxu0 0
    %2168 = vmatpush1.bf16.msra.mxu0 %v2092
    %2169 = vmatprep.subr.bf16.mxu0 0
    %2170 = vmatpush1.bf16.msra.mxu0 0
    %2171 = vmatprep.subr.bf16.mxu0 0
    %2172 = vmatpush1.bf16.msra.mxu0 0
    %2173 = vmatprep.subr.bf16.mxu0 0
    %2174 = vmatpush1.bf16.msra.mxu0 0
    %2175 = vmatprep.subr.bf16.mxu0 0
    %2176 = vmatpush1.bf16.msra.mxu0 0
    %2177 = vmatprep.subr.bf16.mxu0 0
    %2178 = vmatpush1.bf16.msra.mxu0 0
    %2179 = vmatprep.subr.bf16.mxu0 0
    %2180 = vmatpush1.bf16.msra.mxu0 0
    %2181 = vmatprep.subr.bf16.mxu0 0
    %2182 = vmatpush1.bf16.msra.mxu0 0
    %2183 = vmatprep.subr.bf16.mxu0 0
    %2184 = vmatpush1.bf16.msra.mxu0 0
    %2185 = vmatprep.subr.bf16.mxu0 0
    %2186 = vmatpush1.bf16.msra.mxu0 0
    %2187 = vmatprep.subr.bf16.mxu0 0
    %2188 = vmatpush1.bf16.msra.mxu0 0
    %2189 = vmatprep.subr.bf16.mxu0 0
    %2190 = vmatpush1.bf16.msra.mxu0 0
    %2191 = vmatprep.subr.bf16.mxu0 0
    %2192 = vmatpush1.bf16.msra.mxu0 0
    %2193 = vmatprep.subr.bf16.mxu0 0
    %2194 = vmatpush1.bf16.msra.mxu0 0
    %2195 = vmatprep.mubr.bf16.mxu0 0
    %2196 = vmatmul.mubr.bf16.gmra.mrb[0].mxu0 %v2161
    %v2197 = vpop.f32.mrb[0].mxu0
    %v2198 = vadd.f32 0.0, %v2197
    %v2199 = vpop.f32.mrb[0].mxu0
    %v2200 = vpop.f32.mrb[0].mxu0
    %v2201 = vpop.f32.mrb[0].mxu0
    %2202 = vdwg.mxu0
    %v2203 = vld [vmem:[%s11] sm:$0x1]
    %2205 = vset.pattern.permute.xlu0 9
    %2206 = vperm.xlu0 %2205, %v2203
    %v2207 = vpop.permute.xlu0 %2206
    %v2209 = vadd.f32 %v2198, %v2207
    %vm2210 = vcmask 57344
    %2211 = vst.msk [vmem:[#allocation2] sm:$0x1] %vm2210, %v2209
    // Predicated region
    $region50: #{_mro_first_pallas.1} parent=1 // pred_check
      _
    $region51: #{_mro_first_pallas.1} parent=1 // pred_check_branch
      %2213 = sbr.rel (0) target = $region53
    $region52: #{_mro_first_pallas.1} parent=1 // pred_region
      %s2215 = ssub.s32 16, 16
      %2216 = vsyncadd [#allocation3], %s2215
      %s2218 = sshll.u32 [#allocation2], 4
      %s2219 = int_to_ptr.vmem [resolvable:$true] %s2218
      %2221 = dma.vmem_to_hbm [thread:$0]  %s2219, 16, %s12, [#allocation3]
    $region53: #{_mro_first_pallas.1} parent=1 // pred_fallthru
      _
    // Predicated region
    $region54: #{_mro_first_pallas.1} parent=1 // pred_check
      _
    $region55: #{_mro_first_pallas.1} parent=1 // pred_check_branch
      %2223 = sbr.rel (0) target = $region57
    $region56: #{_mro_first_pallas.1} parent=1 // pred_region
      %2224 = dma.done [#allocation3], 16
    $region57: #{_mro_first_pallas.1} parent=1 // pred_fallthru
      _
    %2225 = vsyncpa [#allocation3], 1

</llo_original>
